<compile_context>
chip_gen: v7x
topology: tpu7x:2x2x1
jax: 0.10.0
libtpu: 0.0.40
codegen_flags: <defaults>
</compile_context>

<pallas_src>
import jax
import jax.numpy as jnp
from jax import lax
from jax.experimental import pallas as pl
from jax.experimental.pallas import tpu as pltpu

BN_EPS = 1e-5


def _vmem_limit_bytes(block_bytes, headroom=4 << 20, floor=8 << 20, cap=48 << 20):
    """Scoped-VMEM hint sized from the real per-step buffers (+headroom), capped at
    48 MiB so the hint leaves headroom on v7x (64 MiB) and works on v5e/v6e too."""
    return int(min(max(block_bytes + headroom, floor), cap))


# ------------------- pass 1: conv (in-kernel im2col, one MXU matmul) + BN partial sums -------------------
def _make_conv_stats_kernel(H, W, KH, KW, Ccat, Cout):
    HW = H * W
    KKC = KH * KW * Ccat

    def kernel(cat_ref, w_ref, conv_ref, stats_ref):
        """One batch element per grid step.

        cat_ref:   (1, H+KH-1, W+KW-1, Ccat) bf16  padded, channel-concatenated input
        w_ref:     (Cout, KKC)               bf16  folded conv weight (channel-major)
        conv_ref:  (1, Cout, HW)             bf16  raw conv output, NCHW-flat, lane-dense
        stats_ref: (1, Cout, 2)              f32   packed per-batch channel sum / sum-of-squares
        """
        # Build the KH*KW im2col taps in-kernel from static ref slices (no 9x HBM blow-up).
        # Tap / channel order (kh, kw, c) matches weight.reshape(KKC, Cout).
        taps = [cat_ref[0, kh:kh + H, kw:kw + W, :]            # (H, W, Ccat) bf16
                for kh in range(KH) for kw in range(KW)]
        patches = jnp.concatenate(taps, axis=-1).reshape(HW, KKC)   # (HW, KKC) bf16

        # Single MXU matmul, channel-major result: (Cout, KKC) x (HW, KKC)^T -> (Cout, HW).
        acc = lax.dot_general(w_ref[...], patches,
                              dimension_numbers=(((1,), (1,)), ((), ())),
                              preferred_element_type=jnp.float32)   # (Cout, HW) f32
        conv_ref[0] = acc.astype(conv_ref.dtype)                    # lane-dense bf16 store

        # BN partial sums ride along the pipelined conv steps; packed into one output.
        # (E[x^2]-mean^2 formulation; f32 accumulator, clamped later in the wrapper.)
        s = jnp.sum(acc, axis=1, keepdims=True)                     # (Cout, 1)
        sq = jnp.sum(acc * acc, axis=1, keepdims=True)              # (Cout, 1)
        stats_ref[0] = jnp.concatenate([s, sq], axis=1)             # (Cout, 2)

    return kernel


# ----------------------------- pass 2: lane-dense, NCHW-flat BatchNorm + ReLU -----------------------------
def _bn_relu_kernel(conv_ref, scale_ref, shift_ref, o_ref):
    """conv_ref: (1, Cout, HW) bf16 ; scale/shift: (Cout, 1) f32 (per-channel, sublane
    broadcast) ; o_ref: (1, Cout, HW) out dtype.  Fully lane-dense loads/stores."""
    y = conv_ref[0].astype(jnp.float32) * scale_ref[...] + shift_ref[...]
    o_ref[0] = jnp.maximum(y, 0.0).astype(o_ref.dtype)


def upsampling_block_forward(x, x_skip, weight, gamma, beta, *, kernel_size):
    """x: (N, C_in, H/2, W/2) NCHW; x_skip: (N, C_skip, H, W) NCHW.
    weight: (KH, KW, C_in + C_skip, C_out). Returns (N, C_out, H, W) NCHW."""
    N = x.shape[0]
    H, W = x_skip.shape[2], x_skip.shape[3]
    KH = KW = kernel_size
    Ccat = x.shape[1] + x_skip.shape[1]
    Cout = weight.shape[-1]
    KKC = KH * KW * Ccat
    HW = H * W
    ph_lo = (KH - 1) // 2
    ph_hi = (KH - 1) - ph_lo
    pw_lo = (KW - 1) // 2
    pw_hi = (KW - 1) - pw_lo
    H_pad, W_pad = H + KH - 1, W + KW - 1

    # ---- glue: one fused XLA producer (NCHW->NHWC, nearest 2x upsample, channel concat,
    # 'same' zero pad, bf16 cast).  Only ~1x the conv-input bytes hit HBM (no im2col).
    x_nhwc = jnp.transpose(x, (0, 2, 3, 1))
    skip_nhwc = jnp.transpose(x_skip, (0, 2, 3, 1))
    x_up = jnp.repeat(jnp.repeat(x_nhwc, 2, axis=1), 2, axis=2)      # nearest, scale=2
    cat = jnp.concatenate([x_up, skip_nhwc], axis=-1)                # (N, H, W, Ccat)
    cat_p = jnp.pad(cat, ((0, 0), (ph_lo, ph_hi), (pw_lo, pw_hi), (0, 0))
                    ).astype(jnp.bfloat16)                           # (N, H_pad, W_pad, Ccat)
    w2t = jnp.transpose(weight.reshape(KKC, Cout)).astype(jnp.bfloat16)   # (Cout, KKC)

    # ---- pass 1: conv + per-batch-element BN partial sums ----
    p1_bytes = (2 * H_pad * W_pad * Ccat * 2      # double-buffered padded-input block (bf16)
                + 2 * Cout * KKC * 2              # folded weight (bf16)
                + 2 * Cout * HW * 2               # double-buffered conv-out block (bf16)
                + 2 * Cout * 2 * 4                # packed stats block
                + 2 * HW * KKC * 2                # in-kernel taps + patches working set
                + Cout * HW * 4)                  # f32 accumulator
    conv_out, stats = pl.pallas_call(
        _make_conv_stats_kernel(H, W, KH, KW, Ccat, Cout),
        out_shape=(jax.ShapeDtypeStruct((N, Cout, HW), jnp.bfloat16),
                   jax.ShapeDtypeStruct((N, Cout, 2), jnp.float32)),
        grid=(N,),
        in_specs=[
            pl.BlockSpec((1, H_pad, W_pad, Ccat), lambda n: (n, 0, 0, 0)),
            pl.BlockSpec((Cout, KKC), lambda n: (0, 0)),
        ],
        out_specs=(
            pl.BlockSpec((1, Cout, HW), lambda n: (n, 0, 0)),
            pl.BlockSpec((1, Cout, 2), lambda n: (n, 0, 0)),
        ),
        compiler_params=pltpu.CompilerParams(
            dimension_semantics=("parallel",),        # disjoint blocks -> megacore OK
            vmem_limit_bytes=_vmem_limit_bytes(p1_bytes)),
    )(cat_p, w2t)

    # ---- BN statistics (tiny O(Cout) math; training-mode biased variance, as PyTorch).
    # E[x^2] - mean^2 kept in f32 and clamped at 0 for numerical safety.
    cnt = jnp.float32(N * HW)
    mean = jnp.sum(stats[:, :, 0], axis=0) / cnt
    var = jnp.maximum(jnp.sum(stats[:, :, 1], axis=0) / cnt - mean * mean, 0.0)
    inv = lax.rsqrt(var + BN_EPS)
    scale_c = gamma.astype(jnp.float32) * inv
    shift_c = beta.astype(jnp.float32) - mean * scale_c
    scale_c = scale_c.reshape(Cout, 1)                 # per-channel (sublane) broadcast
    shift_c = shift_c.reshape(Cout, 1)

    # ---- pass 2: lane-dense NCHW-flat BN + ReLU (no trailing transpose needed). ----
    p2_bytes = (2 * Cout * HW * 2                      # double-buffered conv block (bf16)
                + 4 * Cout * 4                         # scale / shift
                + 2 * Cout * HW * x.dtype.itemsize)    # double-buffered output block
    out_flat = pl.pallas_call(
        _bn_relu_kernel,
        out_shape=jax.ShapeDtypeStruct((N, Cout, HW), x.dtype),
        grid=(N,),
        in_specs=[
            pl.BlockSpec((1, Cout, HW), lambda n: (n, 0, 0)),
            pl.BlockSpec((Cout, 1), lambda n: (0, 0)),
            pl.BlockSpec((Cout, 1), lambda n: (0, 0)),
        ],
        out_specs=pl.BlockSpec((1, Cout, HW), lambda n: (n, 0, 0)),
        compiler_params=pltpu.CompilerParams(
            dimension_semantics=("parallel",),
            vmem_limit_bytes=_vmem_limit_bytes(p2_bytes)),
    )(conv_out, scale_c, shift_c)

    # (N, Cout, HW) -> (N, Cout, H, W) is a row-major bitcast: output is already NCHW.
    return out_flat.reshape(N, Cout, H, W)


def _reference(x, x_skip, weight, gamma, beta, kernel_size):
    """Pure-JAX (f32) reference of the PyTorch forward (NCHW)."""
    x_up = jnp.repeat(jnp.repeat(x, 2, axis=2), 2, axis=3)
    cat = jnp.concatenate([x_up, x_skip], axis=1)
    w_oihw = jnp.transpose(weight, (3, 2, 0, 1))
    y = lax.conv_general_dilated(cat, w_oihw, window_strides=(1, 1),
                                 padding="SAME",
                                 dimension_numbers=("NCHW", "OIHW", "NCHW"))
    mean = jnp.mean(y, axis=(0, 2, 3), keepdims=True)
    var = jnp.mean((y - mean) ** 2, axis=(0, 2, 3), keepdims=True)
    yn = (y - mean) / jnp.sqrt(var + BN_EPS) * gamma.reshape(1, -1, 1, 1) \
        + beta.reshape(1, -1, 1, 1)
    return jnp.maximum(yn, 0.0)


if __name__ == "__main__":
    key = jax.random.PRNGKey(0)
    k1, k2, k3 = jax.random.split(key, 3)

    # module config: n_channels_in=4, n_skip_channels_in=6, n_channels_out=8, kernel_size=3
    N, C_IN, C_SKIP, C_OUT, K = 2, 4, 6, 8, 3
    H2, W2 = 8, 8                                   # x spatial (pre-upsample) -> H = W = 16

    x = jax.random.normal(k1, (N, C_IN, H2, W2), jnp.float32)
    x_skip = jax.random.normal(k2, (N, C_SKIP, 2 * H2, 2 * W2), jnp.float32)

    # deterministic param init (kaiming-uniform-like conv; PyTorch BN default affine)
    fan_in = (C_IN + C_SKIP) * K * K
    bound = 1.0 / (fan_in ** 0.5)
    weight = jax.random.uniform(k3, (K, K, C_IN + C_SKIP, C_OUT), jnp.float32,
                                minval=-bound, maxval=bound)
    gamma = jnp.ones((C_OUT,), jnp.float32)
    beta = jnp.zeros((C_OUT,), jnp.float32)

    out = upsampling_block_forward(x, x_skip, weight, gamma, beta, kernel_size=K)
    out = jax.block_until_ready(out)

    ref = _reference(x, x_skip, weight, gamma, beta, K)
    assert out.shape == (N, C_OUT, 2 * H2, 2 * W2), out.shape
    assert jnp.allclose(out, ref, atol=2e-2, rtol=2e-2), \
        float(jnp.max(jnp.abs(out - ref)))

    print("KERNEL_OK")
</pallas_src>

<mosaic_0001>
module attributes {stable_mosaic.version = 11 : i64} {
  func.func @kernel(%arg0: i32, %arg1: memref<1x18x18x10xbf16, #tpu.memory_space<vmem>>, %arg2: memref<8x90xbf16, #tpu.memory_space<vmem>>, %arg3: memref<1x8x256xbf16, #tpu.memory_space<vmem>>, %arg4: memref<1x8x2xf32, #tpu.memory_space<vmem>>) attributes {dimension_semantics = [#tpu.dimension_semantics<parallel>], iteration_bounds = array<i64: 2>, scalar_prefetch = 0 : i64, scratch_operands = 0 : i64, tpu.core_type = #tpu.core_type<tc>, window_params = [{transform_indices = @transform_0, window_bounds = array<i64: 1, 18, 18, 10>}, {pipeline_mode = #tpu.pipeline_mode<synchronous>, transform_indices = @transform_1, window_bounds = array<i64: 8, 90>}, {transform_indices = @transform_2, window_bounds = array<i64: 1, 8, 256>}, {transform_indices = @transform_3, window_bounds = array<i64: 1, 8, 2>}]} {
    %c0 = arith.constant 0 : index
    %c0_0 = arith.constant 0 : index
    %c0_1 = arith.constant 0 : index
    %c0_2 = arith.constant 0 : index
    %0 = vector.load %arg1[%c0, %c0_0, %c0_1, %c0_2] : memref<1x18x18x10xbf16, #tpu.memory_space<vmem>>, vector<1x16x16x10xbf16>
    %1 = vector.shape_cast %0 : vector<1x16x16x10xbf16> to vector<16x16x10xbf16>
    %c0_3 = arith.constant 0 : index
    %c0_4 = arith.constant 0 : index
    %c1 = arith.constant 1 : index
    %c0_5 = arith.constant 0 : index
    %2 = vector.load %arg1[%c0_3, %c0_4, %c1, %c0_5] : memref<1x18x18x10xbf16, #tpu.memory_space<vmem>>, vector<1x16x16x10xbf16>
    %3 = vector.shape_cast %2 : vector<1x16x16x10xbf16> to vector<16x16x10xbf16>
    %c0_6 = arith.constant 0 : index
    %c0_7 = arith.constant 0 : index
    %c2 = arith.constant 2 : index
    %c0_8 = arith.constant 0 : index
    %4 = vector.load %arg1[%c0_6, %c0_7, %c2, %c0_8] : memref<1x18x18x10xbf16, #tpu.memory_space<vmem>>, vector<1x16x16x10xbf16>
    %5 = vector.shape_cast %4 : vector<1x16x16x10xbf16> to vector<16x16x10xbf16>
    %c0_9 = arith.constant 0 : index
    %c1_10 = arith.constant 1 : index
    %c0_11 = arith.constant 0 : index
    %c0_12 = arith.constant 0 : index
    %6 = vector.load %arg1[%c0_9, %c1_10, %c0_11, %c0_12] : memref<1x18x18x10xbf16, #tpu.memory_space<vmem>>, vector<1x16x16x10xbf16>
    %7 = vector.shape_cast %6 : vector<1x16x16x10xbf16> to vector<16x16x10xbf16>
    %c0_13 = arith.constant 0 : index
    %c1_14 = arith.constant 1 : index
    %c1_15 = arith.constant 1 : index
    %c0_16 = arith.constant 0 : index
    %8 = vector.load %arg1[%c0_13, %c1_14, %c1_15, %c0_16] : memref<1x18x18x10xbf16, #tpu.memory_space<vmem>>, vector<1x16x16x10xbf16>
    %9 = vector.shape_cast %8 : vector<1x16x16x10xbf16> to vector<16x16x10xbf16>
    %c0_17 = arith.constant 0 : index
    %c1_18 = arith.constant 1 : index
    %c2_19 = arith.constant 2 : index
    %c0_20 = arith.constant 0 : index
    %10 = vector.load %arg1[%c0_17, %c1_18, %c2_19, %c0_20] : memref<1x18x18x10xbf16, #tpu.memory_space<vmem>>, vector<1x16x16x10xbf16>
    %11 = vector.shape_cast %10 : vector<1x16x16x10xbf16> to vector<16x16x10xbf16>
    %c0_21 = arith.constant 0 : index
    %c2_22 = arith.constant 2 : index
    %c0_23 = arith.constant 0 : index
    %c0_24 = arith.constant 0 : index
    %12 = vector.load %arg1[%c0_21, %c2_22, %c0_23, %c0_24] : memref<1x18x18x10xbf16, #tpu.memory_space<vmem>>, vector<1x16x16x10xbf16>
    %13 = vector.shape_cast %12 : vector<1x16x16x10xbf16> to vector<16x16x10xbf16>
    %c0_25 = arith.constant 0 : index
    %c2_26 = arith.constant 2 : index
    %c1_27 = arith.constant 1 : index
    %c0_28 = arith.constant 0 : index
    %14 = vector.load %arg1[%c0_25, %c2_26, %c1_27, %c0_28] : memref<1x18x18x10xbf16, #tpu.memory_space<vmem>>, vector<1x16x16x10xbf16>
    %15 = vector.shape_cast %14 : vector<1x16x16x10xbf16> to vector<16x16x10xbf16>
    %c0_29 = arith.constant 0 : index
    %c2_30 = arith.constant 2 : index
    %c2_31 = arith.constant 2 : index
    %c0_32 = arith.constant 0 : index
    %16 = vector.load %arg1[%c0_29, %c2_30, %c2_31, %c0_32] : memref<1x18x18x10xbf16, #tpu.memory_space<vmem>>, vector<1x16x16x10xbf16>
    %17 = vector.shape_cast %16 : vector<1x16x16x10xbf16> to vector<16x16x10xbf16>
    %18 = tpu.concatenate %1, %3, %5, %7, %9, %11, %13, %15, %17 in 2 : vector<16x16x10xbf16>, vector<16x16x10xbf16>, vector<16x16x10xbf16>, vector<16x16x10xbf16>, vector<16x16x10xbf16>, vector<16x16x10xbf16>, vector<16x16x10xbf16>, vector<16x16x10xbf16>, vector<16x16x10xbf16> -> vector<16x16x90xbf16>
    %19 = vector.shape_cast %18 : vector<16x16x90xbf16> to vector<256x90xbf16>
    %c0_33 = arith.constant 0 : index
    %c0_34 = arith.constant 0 : index
    %20 = vector.load %arg2[%c0_33, %c0_34] : memref<8x90xbf16, #tpu.memory_space<vmem>>, vector<8x90xbf16>
    %cst = arith.constant dense<0.000000e+00> : vector<8x256xf32>
    %21 = tpu.matmul %20, %19, %cst {dimension_numbers = #tpu.dot_dimension_numbers<[1], [1], [0], [0], [0, 0, 1, 0], [], []>} : vector<8x90xbf16>, vector<256x90xbf16>, vector<8x256xf32> -> vector<8x256xf32>
    %22 = arith.truncf %21 : vector<8x256xf32> to vector<8x256xbf16>
    %c0_35 = arith.constant 0 : index
    %c0_36 = arith.constant 0 : index
    %c0_37 = arith.constant 0 : index
    %23 = vector.load %arg3[%c0_35, %c0_36, %c0_37] : memref<1x8x256xbf16, #tpu.memory_space<vmem>>, vector<1x8x256xbf16>
    %24 = vector.shape_cast %23 : vector<1x8x256xbf16> to vector<8x256xbf16>
    %25 = vector.shape_cast %22 : vector<8x256xbf16> to vector<1x8x256xbf16>
    tpu.vector_store %arg3[%c0_35, %c0_36, %c0_37], %25 {strides = array<i32>} : memref<1x8x256xbf16, #tpu.memory_space<vmem>>, vector<1x8x256xbf16>,
    %cst_38 = arith.constant dense<0.000000e+00> : vector<8xf32>
    %26 = vector.multi_reduction <add>, %21, %cst_38 [1] : vector<8x256xf32> to vector<8xf32>
    %27 = vector.shape_cast %26 : vector<8xf32> to vector<8x1xf32>
    %28 = arith.mulf %21, %21 : vector<8x256xf32>
    %cst_39 = arith.constant dense<0.000000e+00> : vector<8xf32>
    %29 = vector.multi_reduction <add>, %28, %cst_39 [1] : vector<8x256xf32> to vector<8xf32>
    %30 = vector.shape_cast %29 : vector<8xf32> to vector<8x1xf32>
    %31 = tpu.concatenate %27, %30 in 1 : vector<8x1xf32>, vector<8x1xf32> -> vector<8x2xf32>
    %c0_40 = arith.constant 0 : index
    %c0_41 = arith.constant 0 : index
    %c0_42 = arith.constant 0 : index
    %32 = vector.load %arg4[%c0_40, %c0_41, %c0_42] : memref<1x8x2xf32, #tpu.memory_space<vmem>>, vector<1x8x2xf32>
    %33 = vector.shape_cast %32 : vector<1x8x2xf32> to vector<8x2xf32>
    %34 = vector.shape_cast %31 : vector<8x2xf32> to vector<1x8x2xf32>
    tpu.vector_store %arg4[%c0_40, %c0_41, %c0_42], %34 {strides = array<i32>} : memref<1x8x2xf32, #tpu.memory_space<vmem>>, vector<1x8x2xf32>,
    return
  }
  func.func @transform_0(%arg0: i32) -> (i32, i32, i32, i32) {
    %c0_i32 = arith.constant 0 : i32
    %c0_i32_0 = arith.constant 0 : i32
    %c0_i32_1 = arith.constant 0 : i32
    %c0_i32_2 = arith.constant 0 : i32
    return %arg0, %c0_i32, %c0_i32_0, %c0_i32_1 : i32, i32, i32, i32
  }
  func.func @transform_1(%arg0: i32) -> (i32, i32) {
    %c0_i32 = arith.constant 0 : i32
    %c0_i32_0 = arith.constant 0 : i32
    %c0_i32_1 = arith.constant 0 : i32
    return %c0_i32, %c0_i32_0 : i32, i32
  }
  func.func @transform_2(%arg0: i32) -> (i32, i32, i32) {
    %c0_i32 = arith.constant 0 : i32
    %c0_i32_0 = arith.constant 0 : i32
    %c0_i32_1 = arith.constant 0 : i32
    return %arg0, %c0_i32, %c0_i32_0 : i32, i32, i32
  }
  func.func @transform_3(%arg0: i32) -> (i32, i32, i32) {
    %c0_i32 = arith.constant 0 : i32
    %c0_i32_0 = arith.constant 0 : i32
    %c0_i32_1 = arith.constant 0 : i32
    return %arg0, %c0_i32, %c0_i32_0 : i32, i32, i32
  }
}

</mosaic_0001>

<llo_original>
// kernel: tpu_custom_call.1
$region0: #{tpu_custom_call.1}
  #allocation0 [shape = 'u32[]', space=smem, size = 0x4, offset = 0x4, fixed_abs, tag = 'smem constant byte address 0x4 - core index']
  #allocation1 [shape = 'u32[144,128]{1,0:T(1,128)}', space=vmem, size = 0x12000, scoped, tag = 'internal scratch']
  %s0 = inlined_call_operand.vmem [shape: bf16[2,18,18,10], index: 0, kind: input, shape index: {}]
  %s1 = inlined_call_operand.vmem [shape: bf16[8,90], index: 1, kind: input, shape index: {}]
  %s2 = inlined_call_operand.hbm [shape: bf16[2,8,256], index: 2, kind: output, shape index: {0}]
  %s3 = inlined_call_operand.vmem [shape: f32[2,8,2], index: 3, kind: output, shape index: {1}]
  %4 = xla_tuple %s2, %s3
  %s5 = sld [smem:[#allocation0]]
  $region49: #{tpu_custom_call.1} parent=0
    _
  %s7 = ssub.s32 1, %s5
  %s8 = scalar_select 0, %s7, %s5
  $region1: #{tpu_custom_call.1} parent=0
    #allocation2 [shape = 'u8[8192]{0}', space=vmem, size = 0x2000, scoped, tag = 'output window, operand 0']
    #allocation3 [shape = 's32[2]{0}', space=sflag, size = 0x8, scoped, tag = 'scoped memory for tpu_custom_call.1']
    %9 = vsyncpa [#allocation3], 0
    %s10 = scalar_lea.sflag [#allocation3], 1
    %11 = vsyncpa %s10, 0
    loop: start=0, step=1, limit=4
    $region2: #{tpu_custom_call.1} parent=1 // loop_pre_header
      _
    $region3: #{tpu_custom_call.1} parent=1 // loop_header
      %s13 = sphi 0, %s17
      %p14 = scmp.ge.s32.totalorder %s13, 4
      %s23 = sphi 0, %s25
      %s26 = sphi 0, %s23
      %s27 = sphi 0, %s26
      %s43 = sphi 0, %s27
      %s47 = sphi 0, %s47
      %s49 = sphi 0, %s47
      %s50 = sphi 0, %s49
      %s64 = sphi 0, %s50
      %s70 = sphi 0, %s72
      %s73 = sphi 0, %s70
      %s74 = sphi 0, %s73
      %s90 = sphi 0, %s74
      %s96 = sphi 0, %s98
      %s99 = sphi 0, %s96
      %s100 = sphi 0, %s99
      %s116 = sphi 0, %s100
    $region4: #{tpu_custom_call.1} parent=1 // loop_header_branch
      %16 = sbr.rel (%p14) target = $region8
    $region5: #{tpu_custom_call.1} parent=1 // loop_body
      %s18 = ssub.s32 %s13, 1
      %s19 = ssub.s32 %s13, 2
      %s20 = sadd.s32 %s13, 1
      %s21 = ssub.s32 %s13, %s20
      %p22 = scmp.eq.s32.totalorder %s21, 0
      %s24 = sadd.s32 %s23, 1
      %s25 = scalar_select %p22, %s23, %s24
      %p28 = pneg %p22
      %p29 = scmp.eq.s32.totalorder %s13, 1
      %p30 = por %p28, %p29
      %p31 = scmp.ne.s32.totalorder %s23, %s26
      %p32 = scmp.eq.s32.totalorder %s13, 0
      %p33 = por %p31, %p32
      %p34 = scmp.ne.s32.totalorder %s23, %s26
      %p35 = scmp.eq.s32.totalorder %s18, 1
      %p36 = por %p34, %p35
      %p37 = scmp.ne.s32.totalorder %s26, %s27
      %p38 = scmp.eq.s32.totalorder %s18, 0
      %p39 = por %p37, %p38
      %p40 = scmp.ne.s32.totalorder %s26, %s27
      %p41 = scmp.eq.s32.totalorder %s19, 1
      %p42 = por %p40, %p41
      %p44 = scmp.ne.s32.totalorder %s27, %s43
      %p45 = scmp.eq.s32.totalorder %s19, 0
      %p46 = por %p44, %p45
      %s48 = sadd.s32 %s47, 1
      %p51 = scmp.eq.s32.totalorder %s13, 1
      %p52 = scmp.ne.s32.totalorder %s47, %s49
      %p53 = scmp.eq.s32.totalorder %s13, 0
      %p54 = por %p52, %p53
      %p55 = scmp.ne.s32.totalorder %s47, %s49
      %p56 = scmp.eq.s32.totalorder %s18, 1
      %p57 = por %p55, %p56
      %p58 = scmp.ne.s32.totalorder %s49, %s50
      %p59 = scmp.eq.s32.totalorder %s18, 0
      %p60 = por %p58, %p59
      %p61 = scmp.ne.s32.totalorder %s49, %s50
      %p62 = scmp.eq.s32.totalorder %s19, 1
      %p63 = por %p61, %p62
      %p65 = scmp.ne.s32.totalorder %s50, %s64
      %p66 = scmp.eq.s32.totalorder %s19, 0
      %p67 = por %p65, %p66
      %s68 = ssub.s32 %s13, %s20
      %p69 = scmp.eq.s32.totalorder %s68, 0
      %s71 = sadd.s32 %s70, 1
      %s72 = scalar_select %p69, %s70, %s71
      %p75 = pneg %p69
      %p76 = scmp.eq.s32.totalorder %s13, 1
      %p77 = por %p75, %p76
      %p78 = scmp.ne.s32.totalorder %s70, %s73
      %p79 = scmp.eq.s32.totalorder %s13, 0
      %p80 = por %p78, %p79
      %p81 = scmp.ne.s32.totalorder %s70, %s73
      %p82 = scmp.eq.s32.totalorder %s18, 1
      %p83 = por %p81, %p82
      %p84 = scmp.ne.s32.totalorder %s73, %s74
      %p85 = scmp.eq.s32.totalorder %s18, 0
      %p86 = por %p84, %p85
      %p87 = scmp.ne.s32.totalorder %s73, %s74
      %p88 = scmp.eq.s32.totalorder %s19, 1
      %p89 = por %p87, %p88
      %p91 = scmp.ne.s32.totalorder %s74, %s90
      %p92 = scmp.eq.s32.totalorder %s19, 0
      %p93 = por %p91, %p92
      %s94 = ssub.s32 %s13, %s20
      %p95 = scmp.eq.s32.totalorder %s94, 0
      %s97 = sadd.s32 %s96, 1
      %s98 = scalar_select %p95, %s96, %s97
      %p101 = pneg %p95
      %p102 = scmp.eq.s32.totalorder %s13, 1
      %p103 = por %p101, %p102
      %p104 = scmp.ne.s32.totalorder %s96, %s99
      %p105 = scmp.eq.s32.totalorder %s13, 0
      %p106 = por %p104, %p105
      %p107 = scmp.ne.s32.totalorder %s96, %s99
      %p108 = scmp.eq.s32.totalorder %s18, 1
      %p109 = por %p107, %p108
      %p110 = scmp.ne.s32.totalorder %s99, %s100
      %p111 = scmp.eq.s32.totalorder %s18, 0
      %p112 = por %p110, %p111
      %p113 = scmp.ne.s32.totalorder %s99, %s100
      %p114 = scmp.eq.s32.totalorder %s19, 1
      %p115 = por %p113, %p114
      %p117 = scmp.ne.s32.totalorder %s100, %s116
      %p118 = scmp.eq.s32.totalorder %s19, 0
      %p119 = por %p117, %p118
      %p120 = scmp.le.s32.totalorder 1, %s13
      %p121 = scmp.lt.s32.totalorder %s13, 3
      %p122 = pnand %p120, %p121
      %p123 = pneg %p122
      // Predicated region
      $region9: #{tpu_custom_call.1} parent=5 // pred_check
        _
      $region10: #{tpu_custom_call.1} parent=5 // pred_check_branch
        %125 = sbr.rel (%p122) target = $region12
      $region11: #{tpu_custom_call.1} parent=5 // pred_region
        %s126 = ssub.s32 %s13, 1
        // Predicated region
        $region13: #{tpu_custom_call.1} parent=11 // pred_check
          %p127 = pneg %p60
        $region14: #{tpu_custom_call.1} parent=11 // pred_check_branch
          %129 = sbr.rel (%p127) target = $region16
        $region15: #{tpu_custom_call.1} parent=11 // pred_region
          _
        $region16: #{tpu_custom_call.1} parent=11 // pred_fallthru
          _
      $region12: #{tpu_custom_call.1} parent=5 // pred_fallthru
        _
      %p130 = scmp.lt.s32.totalorder %s13, 2
      // Predicated region
      $region17: #{tpu_custom_call.1} parent=5 // pred_check
        %p131 = pneg %p130
      $region18: #{tpu_custom_call.1} parent=5 // pred_check_branch
        %133 = sbr.rel (%p131) target = $region20
      $region19: #{tpu_custom_call.1} parent=5 // pred_region
        // Predicated region
        $region21: #{tpu_custom_call.1} parent=19 // pred_check
          %p134 = pneg %p33
        $region22: #{tpu_custom_call.1} parent=19 // pred_check_branch
          %136 = sbr.rel (%p134) target = $region24
        $region23: #{tpu_custom_call.1} parent=19 // pred_region
          %p137 = scmp.lt.s32.totalorder %s13, 1
          %s138 = scalar_select %p137, %s13, 1
          %s139 = smul.addr %s138, 54
          %s140 = smul.addr %s139, 4
          %s141 = scalar_lea.vmem %s0, %s140
        $region24: #{tpu_custom_call.1} parent=19 // pred_fallthru
          _
      $region20: #{tpu_custom_call.1} parent=5 // pred_fallthru
        _
      %p142 = scmp.le.s32.totalorder 1, %s13
      %p143 = scmp.lt.s32.totalorder %s13, 3
      %p144 = pnand %p142, %p143
      %p145 = pneg %p144
      // Predicated region
      $region25: #{tpu_custom_call.1} parent=5 // pred_check
        _
      $region26: #{tpu_custom_call.1} parent=5 // pred_check_branch
        %147 = sbr.rel (%p144) target = $region28
      $region27: #{tpu_custom_call.1} parent=5 // pred_region
        %s148 = ssub.s32 %s13, 1
        %p149 = scmp.lt.s32.totalorder %s18, 1
        %s150 = scalar_select %p149, %s18, 1
        %s151 = smul.addr %s150, 54
        %s152 = smul.addr %s151, 4
        %s153 = scalar_lea.vmem %s0, %s152
        %p154 = pneg %p39
        %p155 = pneg %p36
        %p156 = pneg %p60
        %p157 = pneg %p57
        %p158 = pneg %p86
        %p159 = pneg %p83
        %s160 = sand.u32 %s73, 1
        %s161 = scalar_lea.sflag [#allocation3], %s160
        %s162 = sand.u32 %s73, 1
        %s163 = smul.addr %s162, 8
        %s164 = scalar_lea.vmem [#allocation2], %s163
        %p165 = pneg %p112
        %p166 = pneg %p109
        %p167 = scmp.lt.s32.totalorder %s18, 1
        %s168 = scalar_select %p167, %s18, 1
        %s169 = smul.addr %s168, 8
        %s170 = scalar_lea.vmem %s3, %s169
        %p171 = scmp.lt.s32.totalorder %s18, 1
        %s172 = scalar_select %p171, %s18, 1
        %s173 = smul.addr %s172, 54
        %s174 = smul.addr %s173, 4
        %s175 = scalar_lea.vmem %s0, %s174
        %p176 = scmp.lt.s32.totalorder %s18, 1
        %s177 = scalar_select %p176, %s18, 1
        %s178 = smul.addr %s177, 8
        %s179 = scalar_lea.vmem %s3, %s178
        %v181 = vld [vmem:[%s175] sm:$0xf]
        %v182 = vld [vmem:[%s175 + $0x4] sm:$0xf]
        %v183 = vld [vmem:[%s175 + $0xc] sm:$0xf]
        %v184 = vld [vmem:[%s175 + $0x10] sm:$0xf]
        %v185 = vld [vmem:[%s175 + $0x18] sm:$0xf]
        %v186 = vld [vmem:[%s175 + $0x1c] sm:$0xf]
        %v187 = vld [vmem:[%s175 + $0x24] sm:$0xf]
        %v188 = vld [vmem:[%s175 + $0x28] sm:$0xf]
        %v189 = vld [vmem:[%s175 + $0x30] sm:$0xf]
        %v190 = vld [vmem:[%s175 + $0x34] sm:$0xf]
        %v191 = vld [vmem:[%s175 + $0x3c] sm:$0xf]
        %v192 = vld [vmem:[%s175 + $0x40] sm:$0xf]
        %v193 = vld [vmem:[%s175 + $0x48] sm:$0xf]
        %v194 = vld [vmem:[%s175 + $0x4c] sm:$0xf]
        %v195 = vld [vmem:[%s175 + $0x54] sm:$0xf]
        %v196 = vld [vmem:[%s175 + $0x58] sm:$0xf]
        %v197 = vld [vmem:[%s175 + $0x60] sm:$0xf]
        %v198 = vld [vmem:[%s175 + $0x64] sm:$0xf]
        %v199 = vld [vmem:[%s175 + $0x6c] sm:$0xf]
        %v200 = vld [vmem:[%s175 + $0x70] sm:$0xf]
        %v201 = vld [vmem:[%s175 + $0x78] sm:$0xf]
        %v202 = vld [vmem:[%s175 + $0x7c] sm:$0xf]
        %v203 = vld [vmem:[%s175 + $0x84] sm:$0xf]
        %v204 = vld [vmem:[%s175 + $0x88] sm:$0xf]
        %v205 = vld [vmem:[%s175 + $0x90] sm:$0xf]
        %v206 = vld [vmem:[%s175 + $0x94] sm:$0xf]
        %v207 = vld [vmem:[%s175 + $0x9c] sm:$0xf]
        %v208 = vld [vmem:[%s175 + $0xa0] sm:$0xf]
        %v209 = vld [vmem:[%s175 + $0xa8] sm:$0xf]
        %v210 = vld [vmem:[%s175 + $0xac] sm:$0xf]
        %v211 = vld [vmem:[%s175 + $0xb4] sm:$0xf]
        %v212 = vld [vmem:[%s175 + $0xb8] sm:$0xf]
        %v213 = vld [vmem:[%s175 + $0x8] sm:$0x1]
        %v214 = vld [vmem:[%s175 + $0x14] sm:$0x1]
        %v215 = vld [vmem:[%s175 + $0x20] sm:$0x1]
        %v216 = vld [vmem:[%s175 + $0x2c] sm:$0x1]
        %v217 = vld [vmem:[%s175 + $0x38] sm:$0x1]
        %v218 = vld [vmem:[%s175 + $0x44] sm:$0x1]
        %v219 = vld [vmem:[%s175 + $0x50] sm:$0x1]
        %v220 = vld [vmem:[%s175 + $0x5c] sm:$0x1]
        %v221 = vld [vmem:[%s175 + $0x68] sm:$0x1]
        %v222 = vld [vmem:[%s175 + $0x74] sm:$0x1]
        %v223 = vld [vmem:[%s175 + $0x80] sm:$0x1]
        %v224 = vld [vmem:[%s175 + $0x8c] sm:$0x1]
        %v225 = vld [vmem:[%s175 + $0x98] sm:$0x1]
        %v226 = vld [vmem:[%s175 + $0xa4] sm:$0x1]
        %v227 = vld [vmem:[%s175 + $0xb0] sm:$0x1]
        %v228 = vld [vmem:[%s175 + $0xbc] sm:$0x1]
        %v229 = vld [vmem:[%s175] sm:$0xe]
        %v230 = vld [vmem:[%s175 + $0xc] sm:$0xe]
        %v231 = vld [vmem:[%s175 + $0x18] sm:$0xe]
        %v232 = vld [vmem:[%s175 + $0x24] sm:$0xe]
        %v233 = vld [vmem:[%s175 + $0x30] sm:$0xe]
        %v234 = vld [vmem:[%s175 + $0x3c] sm:$0xe]
        %v235 = vld [vmem:[%s175 + $0x48] sm:$0xe]
        %v236 = vld [vmem:[%s175 + $0x54] sm:$0xe]
        %v237 = vld [vmem:[%s175 + $0x60] sm:$0xe]
        %v238 = vld [vmem:[%s175 + $0x6c] sm:$0xe]
        %v239 = vld [vmem:[%s175 + $0x78] sm:$0xe]
        %v240 = vld [vmem:[%s175 + $0x84] sm:$0xe]
        %v241 = vld [vmem:[%s175 + $0x90] sm:$0xe]
        %v242 = vld [vmem:[%s175 + $0x9c] sm:$0xe]
        %v243 = vld [vmem:[%s175 + $0xa8] sm:$0xe]
        %v244 = vld [vmem:[%s175 + $0xb4] sm:$0xe]
        %s245 = scalar_lea.vmem %s175, 12
        %v246 = vld [vmem:[%s245] sm:$0xf]
        %v247 = vld [vmem:[%s245 + $0x4] sm:$0xf]
        %v248 = vld [vmem:[%s245 + $0xc] sm:$0xf]
        %v249 = vld [vmem:[%s245 + $0x10] sm:$0xf]
        %v250 = vld [vmem:[%s245 + $0x18] sm:$0xf]
        %v251 = vld [vmem:[%s245 + $0x1c] sm:$0xf]
        %v252 = vld [vmem:[%s245 + $0x24] sm:$0xf]
        %v253 = vld [vmem:[%s245 + $0x28] sm:$0xf]
        %v254 = vld [vmem:[%s245 + $0x30] sm:$0xf]
        %v255 = vld [vmem:[%s245 + $0x34] sm:$0xf]
        %v256 = vld [vmem:[%s245 + $0x3c] sm:$0xf]
        %v257 = vld [vmem:[%s245 + $0x40] sm:$0xf]
        %v258 = vld [vmem:[%s245 + $0x48] sm:$0xf]
        %v259 = vld [vmem:[%s245 + $0x4c] sm:$0xf]
        %v260 = vld [vmem:[%s245 + $0x54] sm:$0xf]
        %v261 = vld [vmem:[%s245 + $0x58] sm:$0xf]
        %v262 = vld [vmem:[%s245 + $0x60] sm:$0xf]
        %v263 = vld [vmem:[%s245 + $0x64] sm:$0xf]
        %v264 = vld [vmem:[%s245 + $0x6c] sm:$0xf]
        %v265 = vld [vmem:[%s245 + $0x70] sm:$0xf]
        %v266 = vld [vmem:[%s245 + $0x78] sm:$0xf]
        %v267 = vld [vmem:[%s245 + $0x7c] sm:$0xf]
        %v268 = vld [vmem:[%s245 + $0x84] sm:$0xf]
        %v269 = vld [vmem:[%s245 + $0x88] sm:$0xf]
        %v270 = vld [vmem:[%s245 + $0x90] sm:$0xf]
        %v271 = vld [vmem:[%s245 + $0x94] sm:$0xf]
        %v272 = vld [vmem:[%s245 + $0x9c] sm:$0xf]
        %v273 = vld [vmem:[%s245 + $0xa0] sm:$0xf]
        %v274 = vld [vmem:[%s245 + $0xa8] sm:$0xf]
        %v275 = vld [vmem:[%s245 + $0xac] sm:$0xf]
        %v276 = vld [vmem:[%s245 + $0xb4] sm:$0xf]
        %v277 = vld [vmem:[%s245 + $0xb8] sm:$0xf]
        %v278 = vld [vmem:[%s245 + $0x8] sm:$0x1]
        %v279 = vld [vmem:[%s245 + $0x14] sm:$0x1]
        %v280 = vld [vmem:[%s245 + $0x20] sm:$0x1]
        %v281 = vld [vmem:[%s245 + $0x2c] sm:$0x1]
        %v282 = vld [vmem:[%s245 + $0x38] sm:$0x1]
        %v283 = vld [vmem:[%s245 + $0x44] sm:$0x1]
        %v284 = vld [vmem:[%s245 + $0x50] sm:$0x1]
        %v285 = vld [vmem:[%s245 + $0x5c] sm:$0x1]
        %v286 = vld [vmem:[%s245 + $0x68] sm:$0x1]
        %v287 = vld [vmem:[%s245 + $0x74] sm:$0x1]
        %v288 = vld [vmem:[%s245 + $0x80] sm:$0x1]
        %v289 = vld [vmem:[%s245 + $0x8c] sm:$0x1]
        %v290 = vld [vmem:[%s245 + $0x98] sm:$0x1]
        %v291 = vld [vmem:[%s245 + $0xa4] sm:$0x1]
        %v292 = vld [vmem:[%s245 + $0xb0] sm:$0x1]
        %v293 = vld [vmem:[%s245 + $0xbc] sm:$0x1]
        %v294 = vld [vmem:[%s245] sm:$0xe]
        %v295 = vld [vmem:[%s245 + $0xc] sm:$0xe]
        %v296 = vld [vmem:[%s245 + $0x18] sm:$0xe]
        %v297 = vld [vmem:[%s245 + $0x24] sm:$0xe]
        %v298 = vld [vmem:[%s245 + $0x30] sm:$0xe]
        %v299 = vld [vmem:[%s245 + $0x3c] sm:$0xe]
        %v300 = vld [vmem:[%s245 + $0x48] sm:$0xe]
        %v301 = vld [vmem:[%s245 + $0x54] sm:$0xe]
        %v302 = vld [vmem:[%s245 + $0x60] sm:$0xe]
        %v303 = vld [vmem:[%s245 + $0x6c] sm:$0xe]
        %v304 = vld [vmem:[%s245 + $0x78] sm:$0xe]
        %v305 = vld [vmem:[%s245 + $0x84] sm:$0xe]
        %v306 = vld [vmem:[%s245 + $0x90] sm:$0xe]
        %v307 = vld [vmem:[%s245 + $0x9c] sm:$0xe]
        %v308 = vld [vmem:[%s245 + $0xa8] sm:$0xe]
        %v309 = vld [vmem:[%s245 + $0xb4] sm:$0xe]
        %s310 = scalar_lea.vmem %s175, 24
        %v311 = vld [vmem:[%s310] sm:$0xf]
        %v312 = vld [vmem:[%s310 + $0x4] sm:$0xf]
        %v313 = vld [vmem:[%s310 + $0xc] sm:$0xf]
        %v314 = vld [vmem:[%s310 + $0x10] sm:$0xf]
        %v315 = vld [vmem:[%s310 + $0x18] sm:$0xf]
        %v316 = vld [vmem:[%s310 + $0x1c] sm:$0xf]
        %v317 = vld [vmem:[%s310 + $0x24] sm:$0xf]
        %v318 = vld [vmem:[%s310 + $0x28] sm:$0xf]
        %v319 = vld [vmem:[%s310 + $0x30] sm:$0xf]
        %v320 = vld [vmem:[%s310 + $0x34] sm:$0xf]
        %v321 = vld [vmem:[%s310 + $0x3c] sm:$0xf]
        %v322 = vld [vmem:[%s310 + $0x40] sm:$0xf]
        %v323 = vld [vmem:[%s310 + $0x48] sm:$0xf]
        %v324 = vld [vmem:[%s310 + $0x4c] sm:$0xf]
        %v325 = vld [vmem:[%s310 + $0x54] sm:$0xf]
        %v326 = vld [vmem:[%s310 + $0x58] sm:$0xf]
        %v327 = vld [vmem:[%s310 + $0x60] sm:$0xf]
        %v328 = vld [vmem:[%s310 + $0x64] sm:$0xf]
        %v329 = vld [vmem:[%s310 + $0x6c] sm:$0xf]
        %v330 = vld [vmem:[%s310 + $0x70] sm:$0xf]
        %v331 = vld [vmem:[%s310 + $0x78] sm:$0xf]
        %v332 = vld [vmem:[%s310 + $0x7c] sm:$0xf]
        %v333 = vld [vmem:[%s310 + $0x84] sm:$0xf]
        %v334 = vld [vmem:[%s310 + $0x88] sm:$0xf]
        %v335 = vld [vmem:[%s310 + $0x90] sm:$0xf]
        %v336 = vld [vmem:[%s310 + $0x94] sm:$0xf]
        %v337 = vld [vmem:[%s310 + $0x9c] sm:$0xf]
        %v338 = vld [vmem:[%s310 + $0xa0] sm:$0xf]
        %v339 = vld [vmem:[%s310 + $0xa8] sm:$0xf]
        %v340 = vld [vmem:[%s310 + $0xac] sm:$0xf]
        %v341 = vld [vmem:[%s310 + $0xb4] sm:$0xf]
        %v342 = vld [vmem:[%s310 + $0xb8] sm:$0xf]
        %v343 = vld [vmem:[%s310 + $0x8] sm:$0x1]
        %v344 = vld [vmem:[%s310 + $0x14] sm:$0x1]
        %v345 = vld [vmem:[%s310 + $0x20] sm:$0x1]
        %v346 = vld [vmem:[%s310 + $0x2c] sm:$0x1]
        %v347 = vld [vmem:[%s310 + $0x38] sm:$0x1]
        %v348 = vld [vmem:[%s310 + $0x44] sm:$0x1]
        %v349 = vld [vmem:[%s310 + $0x50] sm:$0x1]
        %v350 = vld [vmem:[%s310 + $0x5c] sm:$0x1]
        %v351 = vld [vmem:[%s310 + $0x68] sm:$0x1]
        %v352 = vld [vmem:[%s310 + $0x74] sm:$0x1]
        %v353 = vld [vmem:[%s310 + $0x80] sm:$0x1]
        %v354 = vld [vmem:[%s310 + $0x8c] sm:$0x1]
        %v355 = vld [vmem:[%s310 + $0x98] sm:$0x1]
        %v356 = vld [vmem:[%s310 + $0xa4] sm:$0x1]
        %v357 = vld [vmem:[%s310 + $0xb0] sm:$0x1]
        %v358 = vld [vmem:[%s310 + $0xbc] sm:$0x1]
        %v359 = vld [vmem:[%s310] sm:$0xe]
        %v360 = vld [vmem:[%s310 + $0xc] sm:$0xe]
        %v361 = vld [vmem:[%s310 + $0x18] sm:$0xe]
        %v362 = vld [vmem:[%s310 + $0x24] sm:$0xe]
        %v363 = vld [vmem:[%s310 + $0x30] sm:$0xe]
        %v364 = vld [vmem:[%s310 + $0x3c] sm:$0xe]
        %v365 = vld [vmem:[%s310 + $0x48] sm:$0xe]
        %v366 = vld [vmem:[%s310 + $0x54] sm:$0xe]
        %v367 = vld [vmem:[%s310 + $0x60] sm:$0xe]
        %v368 = vld [vmem:[%s310 + $0x6c] sm:$0xe]
        %v369 = vld [vmem:[%s310 + $0x78] sm:$0xe]
        %v370 = vld [vmem:[%s310 + $0x84] sm:$0xe]
        %v371 = vld [vmem:[%s310 + $0x90] sm:$0xe]
        %v372 = vld [vmem:[%s310 + $0x9c] sm:$0xe]
        %v373 = vld [vmem:[%s310 + $0xa8] sm:$0xe]
        %v374 = vld [vmem:[%s310 + $0xb4] sm:$0xe]
        %v407 = vunpack.c.l.b16 %v181
        %v408 = vunpack.c.l.b16 %v182
        %v409 = vunpack.c.l.b16 %v183
        %v410 = vunpack.c.l.b16 %v184
        %v411 = vunpack.c.l.b16 %v185
        %v412 = vunpack.c.l.b16 %v186
        %v413 = vunpack.c.l.b16 %v187
        %v414 = vunpack.c.l.b16 %v188
        %v415 = vunpack.c.l.b16 %v189
        %v416 = vunpack.c.l.b16 %v190
        %v417 = vunpack.c.l.b16 %v191
        %v418 = vunpack.c.l.b16 %v192
        %v419 = vunpack.c.l.b16 %v193
        %v420 = vunpack.c.l.b16 %v194
        %v421 = vunpack.c.l.b16 %v195
        %v422 = vunpack.c.l.b16 %v196
        %v423 = vunpack.c.l.b16 %v197
        %v424 = vunpack.c.l.b16 %v198
        %v425 = vunpack.c.l.b16 %v199
        %v426 = vunpack.c.l.b16 %v200
        %v427 = vunpack.c.l.b16 %v201
        %v428 = vunpack.c.l.b16 %v202
        %v429 = vunpack.c.l.b16 %v203
        %v430 = vunpack.c.l.b16 %v204
        %v431 = vunpack.c.l.b16 %v205
        %v432 = vunpack.c.l.b16 %v206
        %v433 = vunpack.c.l.b16 %v207
        %v434 = vunpack.c.l.b16 %v208
        %v435 = vunpack.c.l.b16 %v209
        %v436 = vunpack.c.l.b16 %v210
        %v437 = vunpack.c.l.b16 %v211
        %v438 = vunpack.c.l.b16 %v212
        %v439 = vpack.c.b16 %v408, %v407
        %v440 = vpack.c.b16 %v410, %v409
        %v441 = vpack.c.b16 %v412, %v411
        %v442 = vpack.c.b16 %v414, %v413
        %v443 = vpack.c.b16 %v416, %v415
        %v444 = vpack.c.b16 %v418, %v417
        %v445 = vpack.c.b16 %v420, %v419
        %v446 = vpack.c.b16 %v422, %v421
        %v447 = vpack.c.b16 %v424, %v423
        %v448 = vpack.c.b16 %v426, %v425
        %v449 = vpack.c.b16 %v428, %v427
        %v450 = vpack.c.b16 %v430, %v429
        %v451 = vpack.c.b16 %v432, %v431
        %v452 = vpack.c.b16 %v434, %v433
        %v453 = vpack.c.b16 %v436, %v435
        %v454 = vpack.c.b16 %v438, %v437
        %v471 = vunpack.c.l.b16 %v213
        %v472 = vunpack.c.l.b16 %v214
        %v473 = vunpack.c.l.b16 %v215
        %v474 = vunpack.c.l.b16 %v216
        %v475 = vunpack.c.l.b16 %v217
        %v476 = vunpack.c.l.b16 %v218
        %v477 = vunpack.c.l.b16 %v219
        %v478 = vunpack.c.l.b16 %v220
        %v479 = vunpack.c.l.b16 %v221
        %v480 = vunpack.c.l.b16 %v222
        %v481 = vunpack.c.l.b16 %v223
        %v482 = vunpack.c.l.b16 %v224
        %v483 = vunpack.c.l.b16 %v225
        %v484 = vunpack.c.l.b16 %v226
        %v485 = vunpack.c.l.b16 %v227
        %v486 = vunpack.c.l.b16 %v228
        %v487 = vpack.c.b16 %v471, %v471
        %v488 = vpack.c.b16 %v472, %v472
        %v489 = vpack.c.b16 %v473, %v473
        %v490 = vpack.c.b16 %v474, %v474
        %v491 = vpack.c.b16 %v475, %v475
        %v492 = vpack.c.b16 %v476, %v476
        %v493 = vpack.c.b16 %v477, %v477
        %v494 = vpack.c.b16 %v478, %v478
        %v495 = vpack.c.b16 %v479, %v479
        %v496 = vpack.c.b16 %v480, %v480
        %v497 = vpack.c.b16 %v481, %v481
        %v498 = vpack.c.b16 %v482, %v482
        %v499 = vpack.c.b16 %v483, %v483
        %v500 = vpack.c.b16 %v484, %v484
        %v501 = vpack.c.b16 %v485, %v485
        %v502 = vpack.c.b16 %v486, %v486
        %vm503 = vsmask.f32 7424
        %v505 = vshrl.u32 %v439, 16
        %v507 = vshll.u32 %v439, 16
        %v509 = vrot.slane %v507, 1
        %v510 = vor.u32 %v505, %v509
        %v512 = vshll.u32 %v487, 16
        %v514 = vrot.slane %v512, 1
        %v515 = vsel %vm503, %v510, %v514
        %v517 = vshrl.u32 %v440, 16
        %v519 = vshll.u32 %v440, 16
        %v521 = vrot.slane %v519, 1
        %v522 = vor.u32 %v517, %v521
        %v524 = vshll.u32 %v488, 16
        %v526 = vrot.slane %v524, 1
        %v527 = vsel %vm503, %v522, %v526
        %v529 = vshrl.u32 %v441, 16
        %v531 = vshll.u32 %v441, 16
        %v533 = vrot.slane %v531, 1
        %v534 = vor.u32 %v529, %v533
        %v536 = vshll.u32 %v489, 16
        %v538 = vrot.slane %v536, 1
        %v539 = vsel %vm503, %v534, %v538
        %v541 = vshrl.u32 %v442, 16
        %v543 = vshll.u32 %v442, 16
        %v545 = vrot.slane %v543, 1
        %v546 = vor.u32 %v541, %v545
        %v548 = vshll.u32 %v490, 16
        %v550 = vrot.slane %v548, 1
        %v551 = vsel %vm503, %v546, %v550
        %v553 = vshrl.u32 %v443, 16
        %v555 = vshll.u32 %v443, 16
        %v557 = vrot.slane %v555, 1
        %v558 = vor.u32 %v553, %v557
        %v560 = vshll.u32 %v491, 16
        %v562 = vrot.slane %v560, 1
        %v563 = vsel %vm503, %v558, %v562
        %v565 = vshrl.u32 %v444, 16
        %v567 = vshll.u32 %v444, 16
        %v569 = vrot.slane %v567, 1
        %v570 = vor.u32 %v565, %v569
        %v572 = vshll.u32 %v492, 16
        %v574 = vrot.slane %v572, 1
        %v575 = vsel %vm503, %v570, %v574
        %v577 = vshrl.u32 %v445, 16
        %v579 = vshll.u32 %v445, 16
        %v581 = vrot.slane %v579, 1
        %v582 = vor.u32 %v577, %v581
        %v584 = vshll.u32 %v493, 16
        %v586 = vrot.slane %v584, 1
        %v587 = vsel %vm503, %v582, %v586
        %v589 = vshrl.u32 %v446, 16
        %v591 = vshll.u32 %v446, 16
        %v593 = vrot.slane %v591, 1
        %v594 = vor.u32 %v589, %v593
        %v596 = vshll.u32 %v494, 16
        %v598 = vrot.slane %v596, 1
        %v599 = vsel %vm503, %v594, %v598
        %v601 = vshrl.u32 %v447, 16
        %v603 = vshll.u32 %v447, 16
        %v605 = vrot.slane %v603, 1
        %v606 = vor.u32 %v601, %v605
        %v608 = vshll.u32 %v495, 16
        %v610 = vrot.slane %v608, 1
        %v611 = vsel %vm503, %v606, %v610
        %v613 = vshrl.u32 %v448, 16
        %v615 = vshll.u32 %v448, 16
        %v617 = vrot.slane %v615, 1
        %v618 = vor.u32 %v613, %v617
        %v620 = vshll.u32 %v496, 16
        %v622 = vrot.slane %v620, 1
        %v623 = vsel %vm503, %v618, %v622
        %v625 = vshrl.u32 %v449, 16
        %v627 = vshll.u32 %v449, 16
        %v629 = vrot.slane %v627, 1
        %v630 = vor.u32 %v625, %v629
        %v632 = vshll.u32 %v497, 16
        %v634 = vrot.slane %v632, 1
        %v635 = vsel %vm503, %v630, %v634
        %v637 = vshrl.u32 %v450, 16
        %v639 = vshll.u32 %v450, 16
        %v641 = vrot.slane %v639, 1
        %v642 = vor.u32 %v637, %v641
        %v644 = vshll.u32 %v498, 16
        %v646 = vrot.slane %v644, 1
        %v647 = vsel %vm503, %v642, %v646
        %v649 = vshrl.u32 %v451, 16
        %v651 = vshll.u32 %v451, 16
        %v653 = vrot.slane %v651, 1
        %v654 = vor.u32 %v649, %v653
        %v656 = vshll.u32 %v499, 16
        %v658 = vrot.slane %v656, 1
        %v659 = vsel %vm503, %v654, %v658
        %v661 = vshrl.u32 %v452, 16
        %v663 = vshll.u32 %v452, 16
        %v665 = vrot.slane %v663, 1
        %v666 = vor.u32 %v661, %v665
        %v668 = vshll.u32 %v500, 16
        %v670 = vrot.slane %v668, 1
        %v671 = vsel %vm503, %v666, %v670
        %v673 = vshrl.u32 %v453, 16
        %v675 = vshll.u32 %v453, 16
        %v677 = vrot.slane %v675, 1
        %v678 = vor.u32 %v673, %v677
        %v680 = vshll.u32 %v501, 16
        %v682 = vrot.slane %v680, 1
        %v683 = vsel %vm503, %v678, %v682
        %v685 = vshrl.u32 %v454, 16
        %v687 = vshll.u32 %v454, 16
        %v689 = vrot.slane %v687, 1
        %v690 = vor.u32 %v685, %v689
        %v692 = vshll.u32 %v502, 16
        %v694 = vrot.slane %v692, 1
        %v695 = vsel %vm503, %v690, %v694
        %696 = vrot.lane.b32.xlu0 %v515, 10
        %v697 = vpop.permute.xlu0 %696
        %698 = vrot.lane.b32.xlu0 %v527, 10
        %v699 = vpop.permute.xlu0 %698
        %700 = vrot.lane.b32.xlu0 %v539, 10
        %v701 = vpop.permute.xlu0 %700
        %702 = vrot.lane.b32.xlu0 %v551, 10
        %v703 = vpop.permute.xlu0 %702
        %704 = vrot.lane.b32.xlu0 %v563, 10
        %v705 = vpop.permute.xlu0 %704
        %706 = vrot.lane.b32.xlu0 %v575, 10
        %v707 = vpop.permute.xlu0 %706
        %708 = vrot.lane.b32.xlu0 %v587, 10
        %v709 = vpop.permute.xlu0 %708
        %710 = vrot.lane.b32.xlu0 %v599, 10
        %v711 = vpop.permute.xlu0 %710
        %712 = vrot.lane.b32.xlu0 %v611, 10
        %v713 = vpop.permute.xlu0 %712
        %714 = vrot.lane.b32.xlu0 %v623, 10
        %v715 = vpop.permute.xlu0 %714
        %716 = vrot.lane.b32.xlu0 %v635, 10
        %v717 = vpop.permute.xlu0 %716
        %718 = vrot.lane.b32.xlu0 %v647, 10
        %v719 = vpop.permute.xlu0 %718
        %720 = vrot.lane.b32.xlu0 %v659, 10
        %v721 = vpop.permute.xlu0 %720
        %722 = vrot.lane.b32.xlu0 %v671, 10
        %v723 = vpop.permute.xlu0 %722
        %724 = vrot.lane.b32.xlu0 %v683, 10
        %v725 = vpop.permute.xlu0 %724
        %726 = vrot.lane.b32.xlu0 %v695, 10
        %v727 = vpop.permute.xlu0 %726
        %v744 = vunpack.c.l.b16 %v229
        %v745 = vunpack.c.l.b16 %v230
        %v746 = vunpack.c.l.b16 %v231
        %v747 = vunpack.c.l.b16 %v232
        %v748 = vunpack.c.l.b16 %v233
        %v749 = vunpack.c.l.b16 %v234
        %v750 = vunpack.c.l.b16 %v235
        %v751 = vunpack.c.l.b16 %v236
        %v752 = vunpack.c.l.b16 %v237
        %v753 = vunpack.c.l.b16 %v238
        %v754 = vunpack.c.l.b16 %v239
        %v755 = vunpack.c.l.b16 %v240
        %v756 = vunpack.c.l.b16 %v241
        %v757 = vunpack.c.l.b16 %v242
        %v758 = vunpack.c.l.b16 %v243
        %v759 = vunpack.c.l.b16 %v244
        %v760 = vpack.c.b16 %v408, %v744
        %v761 = vpack.c.b16 %v410, %v745
        %v762 = vpack.c.b16 %v412, %v746
        %v763 = vpack.c.b16 %v414, %v747
        %v764 = vpack.c.b16 %v416, %v748
        %v765 = vpack.c.b16 %v418, %v749
        %v766 = vpack.c.b16 %v420, %v750
        %v767 = vpack.c.b16 %v422, %v751
        %v768 = vpack.c.b16 %v424, %v752
        %v769 = vpack.c.b16 %v426, %v753
        %v770 = vpack.c.b16 %v428, %v754
        %v771 = vpack.c.b16 %v430, %v755
        %v772 = vpack.c.b16 %v432, %v756
        %v773 = vpack.c.b16 %v434, %v757
        %v774 = vpack.c.b16 %v436, %v758
        %v775 = vpack.c.b16 %v438, %v759
        %vm776 = vcmask 1046528
        %v777 = vrot.slane %v760, 1
        %v778 = vrot.slane %v487, 1
        %v779 = vsel %vm776, %v777, %v778
        %v780 = vrot.slane %v761, 1
        %v781 = vrot.slane %v488, 1
        %v782 = vsel %vm776, %v780, %v781
        %v783 = vrot.slane %v762, 1
        %v784 = vrot.slane %v489, 1
        %v785 = vsel %vm776, %v783, %v784
        %v786 = vrot.slane %v763, 1
        %v787 = vrot.slane %v490, 1
        %v788 = vsel %vm776, %v786, %v787
        %v789 = vrot.slane %v764, 1
        %v790 = vrot.slane %v491, 1
        %v791 = vsel %vm776, %v789, %v790
        %v792 = vrot.slane %v765, 1
        %v793 = vrot.slane %v492, 1
        %v794 = vsel %vm776, %v792, %v793
        %v795 = vrot.slane %v766, 1
        %v796 = vrot.slane %v493, 1
        %v797 = vsel %vm776, %v795, %v796
        %v798 = vrot.slane %v767, 1
        %v799 = vrot.slane %v494, 1
        %v800 = vsel %vm776, %v798, %v799
        %v801 = vrot.slane %v768, 1
        %v802 = vrot.slane %v495, 1
        %v803 = vsel %vm776, %v801, %v802
        %v804 = vrot.slane %v769, 1
        %v805 = vrot.slane %v496, 1
        %v806 = vsel %vm776, %v804, %v805
        %v807 = vrot.slane %v770, 1
        %v808 = vrot.slane %v497, 1
        %v809 = vsel %vm776, %v807, %v808
        %v810 = vrot.slane %v771, 1
        %v811 = vrot.slane %v498, 1
        %v812 = vsel %vm776, %v810, %v811
        %v813 = vrot.slane %v772, 1
        %v814 = vrot.slane %v499, 1
        %v815 = vsel %vm776, %v813, %v814
        %v816 = vrot.slane %v773, 1
        %v817 = vrot.slane %v500, 1
        %v818 = vsel %vm776, %v816, %v817
        %v819 = vrot.slane %v774, 1
        %v820 = vrot.slane %v501, 1
        %v821 = vsel %vm776, %v819, %v820
        %v822 = vrot.slane %v775, 1
        %v823 = vrot.slane %v502, 1
        %v824 = vsel %vm776, %v822, %v823
        %825 = vrot.lane.b32.xlu0 %v779, 20
        %v826 = vpop.permute.xlu0 %825
        %827 = vrot.lane.b32.xlu0 %v782, 20
        %v828 = vpop.permute.xlu0 %827
        %829 = vrot.lane.b32.xlu0 %v785, 20
        %v830 = vpop.permute.xlu0 %829
        %831 = vrot.lane.b32.xlu0 %v788, 20
        %v832 = vpop.permute.xlu0 %831
        %833 = vrot.lane.b32.xlu0 %v791, 20
        %v834 = vpop.permute.xlu0 %833
        %835 = vrot.lane.b32.xlu0 %v794, 20
        %v836 = vpop.permute.xlu0 %835
        %837 = vrot.lane.b32.xlu0 %v797, 20
        %v838 = vpop.permute.xlu0 %837
        %839 = vrot.lane.b32.xlu0 %v800, 20
        %v840 = vpop.permute.xlu0 %839
        %841 = vrot.lane.b32.xlu0 %v803, 20
        %v842 = vpop.permute.xlu0 %841
        %843 = vrot.lane.b32.xlu0 %v806, 20
        %v844 = vpop.permute.xlu0 %843
        %845 = vrot.lane.b32.xlu0 %v809, 20
        %v846 = vpop.permute.xlu0 %845
        %847 = vrot.lane.b32.xlu0 %v812, 20
        %v848 = vpop.permute.xlu0 %847
        %849 = vrot.lane.b32.xlu0 %v815, 20
        %v850 = vpop.permute.xlu0 %849
        %851 = vrot.lane.b32.xlu0 %v818, 20
        %v852 = vpop.permute.xlu0 %851
        %853 = vrot.lane.b32.xlu0 %v821, 20
        %v854 = vpop.permute.xlu0 %853
        %855 = vrot.lane.b32.xlu0 %v824, 20
        %v856 = vpop.permute.xlu0 %855
        %v889 = vunpack.c.l.b16 %v246
        %v890 = vunpack.c.l.b16 %v247
        %v891 = vunpack.c.l.b16 %v248
        %v892 = vunpack.c.l.b16 %v249
        %v893 = vunpack.c.l.b16 %v250
        %v894 = vunpack.c.l.b16 %v251
        %v895 = vunpack.c.l.b16 %v252
        %v896 = vunpack.c.l.b16 %v253
        %v897 = vunpack.c.l.b16 %v254
        %v898 = vunpack.c.l.b16 %v255
        %v899 = vunpack.c.l.b16 %v256
        %v900 = vunpack.c.l.b16 %v257
        %v901 = vunpack.c.l.b16 %v258
        %v902 = vunpack.c.l.b16 %v259
        %v903 = vunpack.c.l.b16 %v260
        %v904 = vunpack.c.l.b16 %v261
        %v905 = vunpack.c.l.b16 %v262
        %v906 = vunpack.c.l.b16 %v263
        %v907 = vunpack.c.l.b16 %v264
        %v908 = vunpack.c.l.b16 %v265
        %v909 = vunpack.c.l.b16 %v266
        %v910 = vunpack.c.l.b16 %v267
        %v911 = vunpack.c.l.b16 %v268
        %v912 = vunpack.c.l.b16 %v269
        %v913 = vunpack.c.l.b16 %v270
        %v914 = vunpack.c.l.b16 %v271
        %v915 = vunpack.c.l.b16 %v272
        %v916 = vunpack.c.l.b16 %v273
        %v917 = vunpack.c.l.b16 %v274
        %v918 = vunpack.c.l.b16 %v275
        %v919 = vunpack.c.l.b16 %v276
        %v920 = vunpack.c.l.b16 %v277
        %v921 = vpack.c.b16 %v890, %v889
        %v922 = vpack.c.b16 %v892, %v891
        %v923 = vpack.c.b16 %v894, %v893
        %v924 = vpack.c.b16 %v896, %v895
        %v925 = vpack.c.b16 %v898, %v897
        %v926 = vpack.c.b16 %v900, %v899
        %v927 = vpack.c.b16 %v902, %v901
        %v928 = vpack.c.b16 %v904, %v903
        %v929 = vpack.c.b16 %v906, %v905
        %v930 = vpack.c.b16 %v908, %v907
        %v931 = vpack.c.b16 %v910, %v909
        %v932 = vpack.c.b16 %v912, %v911
        %v933 = vpack.c.b16 %v914, %v913
        %v934 = vpack.c.b16 %v916, %v915
        %v935 = vpack.c.b16 %v918, %v917
        %v936 = vpack.c.b16 %v920, %v919
        %937 = vrot.lane.b32.xlu0 %v921, 30
        %v938 = vpop.permute.xlu0 %937
        %939 = vrot.lane.b32.xlu0 %v922, 30
        %v940 = vpop.permute.xlu0 %939
        %941 = vrot.lane.b32.xlu0 %v923, 30
        %v942 = vpop.permute.xlu0 %941
        %943 = vrot.lane.b32.xlu0 %v924, 30
        %v944 = vpop.permute.xlu0 %943
        %945 = vrot.lane.b32.xlu0 %v925, 30
        %v946 = vpop.permute.xlu0 %945
        %947 = vrot.lane.b32.xlu0 %v926, 30
        %v948 = vpop.permute.xlu0 %947
        %949 = vrot.lane.b32.xlu0 %v927, 30
        %v950 = vpop.permute.xlu0 %949
        %951 = vrot.lane.b32.xlu0 %v928, 30
        %v952 = vpop.permute.xlu0 %951
        %953 = vrot.lane.b32.xlu0 %v929, 30
        %v954 = vpop.permute.xlu0 %953
        %955 = vrot.lane.b32.xlu0 %v930, 30
        %v956 = vpop.permute.xlu0 %955
        %957 = vrot.lane.b32.xlu0 %v931, 30
        %v958 = vpop.permute.xlu0 %957
        %959 = vrot.lane.b32.xlu0 %v932, 30
        %v960 = vpop.permute.xlu0 %959
        %961 = vrot.lane.b32.xlu0 %v933, 30
        %v962 = vpop.permute.xlu0 %961
        %963 = vrot.lane.b32.xlu0 %v934, 30
        %v964 = vpop.permute.xlu0 %963
        %965 = vrot.lane.b32.xlu0 %v935, 30
        %v966 = vpop.permute.xlu0 %965
        %967 = vrot.lane.b32.xlu0 %v936, 30
        %v968 = vpop.permute.xlu0 %967
        %v985 = vunpack.c.l.b16 %v278
        %v986 = vunpack.c.l.b16 %v279
        %v987 = vunpack.c.l.b16 %v280
        %v988 = vunpack.c.l.b16 %v281
        %v989 = vunpack.c.l.b16 %v282
        %v990 = vunpack.c.l.b16 %v283
        %v991 = vunpack.c.l.b16 %v284
        %v992 = vunpack.c.l.b16 %v285
        %v993 = vunpack.c.l.b16 %v286
        %v994 = vunpack.c.l.b16 %v287
        %v995 = vunpack.c.l.b16 %v288
        %v996 = vunpack.c.l.b16 %v289
        %v997 = vunpack.c.l.b16 %v290
        %v998 = vunpack.c.l.b16 %v291
        %v999 = vunpack.c.l.b16 %v292
        %v1000 = vunpack.c.l.b16 %v293
        %v1001 = vpack.c.b16 %v985, %v985
        %v1002 = vpack.c.b16 %v986, %v986
        %v1003 = vpack.c.b16 %v987, %v987
        %v1004 = vpack.c.b16 %v988, %v988
        %v1005 = vpack.c.b16 %v989, %v989
        %v1006 = vpack.c.b16 %v990, %v990
        %v1007 = vpack.c.b16 %v991, %v991
        %v1008 = vpack.c.b16 %v992, %v992
        %v1009 = vpack.c.b16 %v993, %v993
        %v1010 = vpack.c.b16 %v994, %v994
        %v1011 = vpack.c.b16 %v995, %v995
        %v1012 = vpack.c.b16 %v996, %v996
        %v1013 = vpack.c.b16 %v997, %v997
        %v1014 = vpack.c.b16 %v998, %v998
        %v1015 = vpack.c.b16 %v999, %v999
        %v1016 = vpack.c.b16 %v1000, %v1000
        %v1018 = vshrl.u32 %v921, 16
        %v1020 = vshll.u32 %v921, 16
        %v1022 = vrot.slane %v1020, 1
        %v1023 = vor.u32 %v1018, %v1022
        %v1025 = vshll.u32 %v1001, 16
        %v1027 = vrot.slane %v1025, 1
        %v1028 = vsel %vm503, %v1023, %v1027
        %v1030 = vshrl.u32 %v922, 16
        %v1032 = vshll.u32 %v922, 16
        %v1034 = vrot.slane %v1032, 1
        %v1035 = vor.u32 %v1030, %v1034
        %v1037 = vshll.u32 %v1002, 16
        %v1039 = vrot.slane %v1037, 1
        %v1040 = vsel %vm503, %v1035, %v1039
        %v1042 = vshrl.u32 %v923, 16
        %v1044 = vshll.u32 %v923, 16
        %v1046 = vrot.slane %v1044, 1
        %v1047 = vor.u32 %v1042, %v1046
        %v1049 = vshll.u32 %v1003, 16
        %v1051 = vrot.slane %v1049, 1
        %v1052 = vsel %vm503, %v1047, %v1051
        %v1054 = vshrl.u32 %v924, 16
        %v1056 = vshll.u32 %v924, 16
        %v1058 = vrot.slane %v1056, 1
        %v1059 = vor.u32 %v1054, %v1058
        %v1061 = vshll.u32 %v1004, 16
        %v1063 = vrot.slane %v1061, 1
        %v1064 = vsel %vm503, %v1059, %v1063
        %v1066 = vshrl.u32 %v925, 16
        %v1068 = vshll.u32 %v925, 16
        %v1070 = vrot.slane %v1068, 1
        %v1071 = vor.u32 %v1066, %v1070
        %v1073 = vshll.u32 %v1005, 16
        %v1075 = vrot.slane %v1073, 1
        %v1076 = vsel %vm503, %v1071, %v1075
        %v1078 = vshrl.u32 %v926, 16
        %v1080 = vshll.u32 %v926, 16
        %v1082 = vrot.slane %v1080, 1
        %v1083 = vor.u32 %v1078, %v1082
        %v1085 = vshll.u32 %v1006, 16
        %v1087 = vrot.slane %v1085, 1
        %v1088 = vsel %vm503, %v1083, %v1087
        %v1090 = vshrl.u32 %v927, 16
        %v1092 = vshll.u32 %v927, 16
        %v1094 = vrot.slane %v1092, 1
        %v1095 = vor.u32 %v1090, %v1094
        %v1097 = vshll.u32 %v1007, 16
        %v1099 = vrot.slane %v1097, 1
        %v1100 = vsel %vm503, %v1095, %v1099
        %v1102 = vshrl.u32 %v928, 16
        %v1104 = vshll.u32 %v928, 16
        %v1106 = vrot.slane %v1104, 1
        %v1107 = vor.u32 %v1102, %v1106
        %v1109 = vshll.u32 %v1008, 16
        %v1111 = vrot.slane %v1109, 1
        %v1112 = vsel %vm503, %v1107, %v1111
        %v1114 = vshrl.u32 %v929, 16
        %v1116 = vshll.u32 %v929, 16
        %v1118 = vrot.slane %v1116, 1
        %v1119 = vor.u32 %v1114, %v1118
        %v1121 = vshll.u32 %v1009, 16
        %v1123 = vrot.slane %v1121, 1
        %v1124 = vsel %vm503, %v1119, %v1123
        %v1126 = vshrl.u32 %v930, 16
        %v1128 = vshll.u32 %v930, 16
        %v1130 = vrot.slane %v1128, 1
        %v1131 = vor.u32 %v1126, %v1130
        %v1133 = vshll.u32 %v1010, 16
        %v1135 = vrot.slane %v1133, 1
        %v1136 = vsel %vm503, %v1131, %v1135
        %v1138 = vshrl.u32 %v931, 16
        %v1140 = vshll.u32 %v931, 16
        %v1142 = vrot.slane %v1140, 1
        %v1143 = vor.u32 %v1138, %v1142
        %v1145 = vshll.u32 %v1011, 16
        %v1147 = vrot.slane %v1145, 1
        %v1148 = vsel %vm503, %v1143, %v1147
        %v1150 = vshrl.u32 %v932, 16
        %v1152 = vshll.u32 %v932, 16
        %v1154 = vrot.slane %v1152, 1
        %v1155 = vor.u32 %v1150, %v1154
        %v1157 = vshll.u32 %v1012, 16
        %v1159 = vrot.slane %v1157, 1
        %v1160 = vsel %vm503, %v1155, %v1159
        %v1162 = vshrl.u32 %v933, 16
        %v1164 = vshll.u32 %v933, 16
        %v1166 = vrot.slane %v1164, 1
        %v1167 = vor.u32 %v1162, %v1166
        %v1169 = vshll.u32 %v1013, 16
        %v1171 = vrot.slane %v1169, 1
        %v1172 = vsel %vm503, %v1167, %v1171
        %v1174 = vshrl.u32 %v934, 16
        %v1176 = vshll.u32 %v934, 16
        %v1178 = vrot.slane %v1176, 1
        %v1179 = vor.u32 %v1174, %v1178
        %v1181 = vshll.u32 %v1014, 16
        %v1183 = vrot.slane %v1181, 1
        %v1184 = vsel %vm503, %v1179, %v1183
        %v1186 = vshrl.u32 %v935, 16
        %v1188 = vshll.u32 %v935, 16
        %v1190 = vrot.slane %v1188, 1
        %v1191 = vor.u32 %v1186, %v1190
        %v1193 = vshll.u32 %v1015, 16
        %v1195 = vrot.slane %v1193, 1
        %v1196 = vsel %vm503, %v1191, %v1195
        %v1198 = vshrl.u32 %v936, 16
        %v1200 = vshll.u32 %v936, 16
        %v1202 = vrot.slane %v1200, 1
        %v1203 = vor.u32 %v1198, %v1202
        %v1205 = vshll.u32 %v1016, 16
        %v1207 = vrot.slane %v1205, 1
        %v1208 = vsel %vm503, %v1203, %v1207
        %1209 = vrot.lane.b32.xlu0 %v1028, 40
        %v1210 = vpop.permute.xlu0 %1209
        %1211 = vrot.lane.b32.xlu0 %v1040, 40
        %v1212 = vpop.permute.xlu0 %1211
        %1213 = vrot.lane.b32.xlu0 %v1052, 40
        %v1214 = vpop.permute.xlu0 %1213
        %1215 = vrot.lane.b32.xlu0 %v1064, 40
        %v1216 = vpop.permute.xlu0 %1215
        %1217 = vrot.lane.b32.xlu0 %v1076, 40
        %v1218 = vpop.permute.xlu0 %1217
        %1219 = vrot.lane.b32.xlu0 %v1088, 40
        %v1220 = vpop.permute.xlu0 %1219
        %1221 = vrot.lane.b32.xlu0 %v1100, 40
        %v1222 = vpop.permute.xlu0 %1221
        %1223 = vrot.lane.b32.xlu0 %v1112, 40
        %v1224 = vpop.permute.xlu0 %1223
        %1225 = vrot.lane.b32.xlu0 %v1124, 40
        %v1226 = vpop.permute.xlu0 %1225
        %1227 = vrot.lane.b32.xlu0 %v1136, 40
        %v1228 = vpop.permute.xlu0 %1227
        %1229 = vrot.lane.b32.xlu0 %v1148, 40
        %v1230 = vpop.permute.xlu0 %1229
        %1231 = vrot.lane.b32.xlu0 %v1160, 40
        %v1232 = vpop.permute.xlu0 %1231
        %1233 = vrot.lane.b32.xlu0 %v1172, 40
        %v1234 = vpop.permute.xlu0 %1233
        %1235 = vrot.lane.b32.xlu0 %v1184, 40
        %v1236 = vpop.permute.xlu0 %1235
        %1237 = vrot.lane.b32.xlu0 %v1196, 40
        %v1238 = vpop.permute.xlu0 %1237
        %1239 = vrot.lane.b32.xlu0 %v1208, 40
        %v1240 = vpop.permute.xlu0 %1239
        %v1257 = vunpack.c.l.b16 %v294
        %v1258 = vunpack.c.l.b16 %v295
        %v1259 = vunpack.c.l.b16 %v296
        %v1260 = vunpack.c.l.b16 %v297
        %v1261 = vunpack.c.l.b16 %v298
        %v1262 = vunpack.c.l.b16 %v299
        %v1263 = vunpack.c.l.b16 %v300
        %v1264 = vunpack.c.l.b16 %v301
        %v1265 = vunpack.c.l.b16 %v302
        %v1266 = vunpack.c.l.b16 %v303
        %v1267 = vunpack.c.l.b16 %v304
        %v1268 = vunpack.c.l.b16 %v305
        %v1269 = vunpack.c.l.b16 %v306
        %v1270 = vunpack.c.l.b16 %v307
        %v1271 = vunpack.c.l.b16 %v308
        %v1272 = vunpack.c.l.b16 %v309
        %v1273 = vpack.c.b16 %v890, %v1257
        %v1274 = vpack.c.b16 %v892, %v1258
        %v1275 = vpack.c.b16 %v894, %v1259
        %v1276 = vpack.c.b16 %v896, %v1260
        %v1277 = vpack.c.b16 %v898, %v1261
        %v1278 = vpack.c.b16 %v900, %v1262
        %v1279 = vpack.c.b16 %v902, %v1263
        %v1280 = vpack.c.b16 %v904, %v1264
        %v1281 = vpack.c.b16 %v906, %v1265
        %v1282 = vpack.c.b16 %v908, %v1266
        %v1283 = vpack.c.b16 %v910, %v1267
        %v1284 = vpack.c.b16 %v912, %v1268
        %v1285 = vpack.c.b16 %v914, %v1269
        %v1286 = vpack.c.b16 %v916, %v1270
        %v1287 = vpack.c.b16 %v918, %v1271
        %v1288 = vpack.c.b16 %v920, %v1272
        %v1289 = vrot.slane %v1273, 1
        %v1290 = vrot.slane %v1001, 1
        %v1291 = vsel %vm776, %v1289, %v1290
        %v1292 = vrot.slane %v1274, 1
        %v1293 = vrot.slane %v1002, 1
        %v1294 = vsel %vm776, %v1292, %v1293
        %v1295 = vrot.slane %v1275, 1
        %v1296 = vrot.slane %v1003, 1
        %v1297 = vsel %vm776, %v1295, %v1296
        %v1298 = vrot.slane %v1276, 1
        %v1299 = vrot.slane %v1004, 1
        %v1300 = vsel %vm776, %v1298, %v1299
        %v1301 = vrot.slane %v1277, 1
        %v1302 = vrot.slane %v1005, 1
        %v1303 = vsel %vm776, %v1301, %v1302
        %v1304 = vrot.slane %v1278, 1
        %v1305 = vrot.slane %v1006, 1
        %v1306 = vsel %vm776, %v1304, %v1305
        %v1307 = vrot.slane %v1279, 1
        %v1308 = vrot.slane %v1007, 1
        %v1309 = vsel %vm776, %v1307, %v1308
        %v1310 = vrot.slane %v1280, 1
        %v1311 = vrot.slane %v1008, 1
        %v1312 = vsel %vm776, %v1310, %v1311
        %v1313 = vrot.slane %v1281, 1
        %v1314 = vrot.slane %v1009, 1
        %v1315 = vsel %vm776, %v1313, %v1314
        %v1316 = vrot.slane %v1282, 1
        %v1317 = vrot.slane %v1010, 1
        %v1318 = vsel %vm776, %v1316, %v1317
        %v1319 = vrot.slane %v1283, 1
        %v1320 = vrot.slane %v1011, 1
        %v1321 = vsel %vm776, %v1319, %v1320
        %v1322 = vrot.slane %v1284, 1
        %v1323 = vrot.slane %v1012, 1
        %v1324 = vsel %vm776, %v1322, %v1323
        %v1325 = vrot.slane %v1285, 1
        %v1326 = vrot.slane %v1013, 1
        %v1327 = vsel %vm776, %v1325, %v1326
        %v1328 = vrot.slane %v1286, 1
        %v1329 = vrot.slane %v1014, 1
        %v1330 = vsel %vm776, %v1328, %v1329
        %v1331 = vrot.slane %v1287, 1
        %v1332 = vrot.slane %v1015, 1
        %v1333 = vsel %vm776, %v1331, %v1332
        %v1334 = vrot.slane %v1288, 1
        %v1335 = vrot.slane %v1016, 1
        %v1336 = vsel %vm776, %v1334, %v1335
        %1337 = vrot.lane.b32.xlu0 %v1291, 50
        %v1338 = vpop.permute.xlu0 %1337
        %1339 = vrot.lane.b32.xlu0 %v1294, 50
        %v1340 = vpop.permute.xlu0 %1339
        %1341 = vrot.lane.b32.xlu0 %v1297, 50
        %v1342 = vpop.permute.xlu0 %1341
        %1343 = vrot.lane.b32.xlu0 %v1300, 50
        %v1344 = vpop.permute.xlu0 %1343
        %1345 = vrot.lane.b32.xlu0 %v1303, 50
        %v1346 = vpop.permute.xlu0 %1345
        %1347 = vrot.lane.b32.xlu0 %v1306, 50
        %v1348 = vpop.permute.xlu0 %1347
        %1349 = vrot.lane.b32.xlu0 %v1309, 50
        %v1350 = vpop.permute.xlu0 %1349
        %1351 = vrot.lane.b32.xlu0 %v1312, 50
        %v1352 = vpop.permute.xlu0 %1351
        %1353 = vrot.lane.b32.xlu0 %v1315, 50
        %v1354 = vpop.permute.xlu0 %1353
        %1355 = vrot.lane.b32.xlu0 %v1318, 50
        %v1356 = vpop.permute.xlu0 %1355
        %1357 = vrot.lane.b32.xlu0 %v1321, 50
        %v1358 = vpop.permute.xlu0 %1357
        %1359 = vrot.lane.b32.xlu0 %v1324, 50
        %v1360 = vpop.permute.xlu0 %1359
        %1361 = vrot.lane.b32.xlu0 %v1327, 50
        %v1362 = vpop.permute.xlu0 %1361
        %1363 = vrot.lane.b32.xlu0 %v1330, 50
        %v1364 = vpop.permute.xlu0 %1363
        %1365 = vrot.lane.b32.xlu0 %v1333, 50
        %v1366 = vpop.permute.xlu0 %1365
        %1367 = vrot.lane.b32.xlu0 %v1336, 50
        %v1368 = vpop.permute.xlu0 %1367
        %v1401 = vunpack.c.l.b16 %v311
        %v1402 = vunpack.c.l.b16 %v312
        %v1403 = vunpack.c.l.b16 %v313
        %v1404 = vunpack.c.l.b16 %v314
        %v1405 = vunpack.c.l.b16 %v315
        %v1406 = vunpack.c.l.b16 %v316
        %v1407 = vunpack.c.l.b16 %v317
        %v1408 = vunpack.c.l.b16 %v318
        %v1409 = vunpack.c.l.b16 %v319
        %v1410 = vunpack.c.l.b16 %v320
        %v1411 = vunpack.c.l.b16 %v321
        %v1412 = vunpack.c.l.b16 %v322
        %v1413 = vunpack.c.l.b16 %v323
        %v1414 = vunpack.c.l.b16 %v324
        %v1415 = vunpack.c.l.b16 %v325
        %v1416 = vunpack.c.l.b16 %v326
        %v1417 = vunpack.c.l.b16 %v327
        %v1418 = vunpack.c.l.b16 %v328
        %v1419 = vunpack.c.l.b16 %v329
        %v1420 = vunpack.c.l.b16 %v330
        %v1421 = vunpack.c.l.b16 %v331
        %v1422 = vunpack.c.l.b16 %v332
        %v1423 = vunpack.c.l.b16 %v333
        %v1424 = vunpack.c.l.b16 %v334
        %v1425 = vunpack.c.l.b16 %v335
        %v1426 = vunpack.c.l.b16 %v336
        %v1427 = vunpack.c.l.b16 %v337
        %v1428 = vunpack.c.l.b16 %v338
        %v1429 = vunpack.c.l.b16 %v339
        %v1430 = vunpack.c.l.b16 %v340
        %v1431 = vunpack.c.l.b16 %v341
        %v1432 = vunpack.c.l.b16 %v342
        %v1433 = vpack.c.b16 %v1402, %v1401
        %v1434 = vpack.c.b16 %v1404, %v1403
        %v1435 = vpack.c.b16 %v1406, %v1405
        %v1436 = vpack.c.b16 %v1408, %v1407
        %v1437 = vpack.c.b16 %v1410, %v1409
        %v1438 = vpack.c.b16 %v1412, %v1411
        %v1439 = vpack.c.b16 %v1414, %v1413
        %v1440 = vpack.c.b16 %v1416, %v1415
        %v1441 = vpack.c.b16 %v1418, %v1417
        %v1442 = vpack.c.b16 %v1420, %v1419
        %v1443 = vpack.c.b16 %v1422, %v1421
        %v1444 = vpack.c.b16 %v1424, %v1423
        %v1445 = vpack.c.b16 %v1426, %v1425
        %v1446 = vpack.c.b16 %v1428, %v1427
        %v1447 = vpack.c.b16 %v1430, %v1429
        %v1448 = vpack.c.b16 %v1432, %v1431
        %1449 = vrot.lane.b32.xlu0 %v1433, 60
        %v1450 = vpop.permute.xlu0 %1449
        %1451 = vrot.lane.b32.xlu0 %v1434, 60
        %v1452 = vpop.permute.xlu0 %1451
        %1453 = vrot.lane.b32.xlu0 %v1435, 60
        %v1454 = vpop.permute.xlu0 %1453
        %1455 = vrot.lane.b32.xlu0 %v1436, 60
        %v1456 = vpop.permute.xlu0 %1455
        %1457 = vrot.lane.b32.xlu0 %v1437, 60
        %v1458 = vpop.permute.xlu0 %1457
        %1459 = vrot.lane.b32.xlu0 %v1438, 60
        %v1460 = vpop.permute.xlu0 %1459
        %1461 = vrot.lane.b32.xlu0 %v1439, 60
        %v1462 = vpop.permute.xlu0 %1461
        %1463 = vrot.lane.b32.xlu0 %v1440, 60
        %v1464 = vpop.permute.xlu0 %1463
        %1465 = vrot.lane.b32.xlu0 %v1441, 60
        %v1466 = vpop.permute.xlu0 %1465
        %1467 = vrot.lane.b32.xlu0 %v1442, 60
        %v1468 = vpop.permute.xlu0 %1467
        %1469 = vrot.lane.b32.xlu0 %v1443, 60
        %v1470 = vpop.permute.xlu0 %1469
        %1471 = vrot.lane.b32.xlu0 %v1444, 60
        %v1472 = vpop.permute.xlu0 %1471
        %1473 = vrot.lane.b32.xlu0 %v1445, 60
        %v1474 = vpop.permute.xlu0 %1473
        %1475 = vrot.lane.b32.xlu0 %v1446, 60
        %v1476 = vpop.permute.xlu0 %1475
        %1477 = vrot.lane.b32.xlu0 %v1447, 60
        %v1478 = vpop.permute.xlu0 %1477
        %1479 = vrot.lane.b32.xlu0 %v1448, 60
        %v1480 = vpop.permute.xlu0 %1479
        %v1497 = vunpack.c.l.b16 %v343
        %v1498 = vunpack.c.l.b16 %v344
        %v1499 = vunpack.c.l.b16 %v345
        %v1500 = vunpack.c.l.b16 %v346
        %v1501 = vunpack.c.l.b16 %v347
        %v1502 = vunpack.c.l.b16 %v348
        %v1503 = vunpack.c.l.b16 %v349
        %v1504 = vunpack.c.l.b16 %v350
        %v1505 = vunpack.c.l.b16 %v351
        %v1506 = vunpack.c.l.b16 %v352
        %v1507 = vunpack.c.l.b16 %v353
        %v1508 = vunpack.c.l.b16 %v354
        %v1509 = vunpack.c.l.b16 %v355
        %v1510 = vunpack.c.l.b16 %v356
        %v1511 = vunpack.c.l.b16 %v357
        %v1512 = vunpack.c.l.b16 %v358
        %v1513 = vpack.c.b16 %v1497, %v1497
        %v1514 = vpack.c.b16 %v1498, %v1498
        %v1515 = vpack.c.b16 %v1499, %v1499
        %v1516 = vpack.c.b16 %v1500, %v1500
        %v1517 = vpack.c.b16 %v1501, %v1501
        %v1518 = vpack.c.b16 %v1502, %v1502
        %v1519 = vpack.c.b16 %v1503, %v1503
        %v1520 = vpack.c.b16 %v1504, %v1504
        %v1521 = vpack.c.b16 %v1505, %v1505
        %v1522 = vpack.c.b16 %v1506, %v1506
        %v1523 = vpack.c.b16 %v1507, %v1507
        %v1524 = vpack.c.b16 %v1508, %v1508
        %v1525 = vpack.c.b16 %v1509, %v1509
        %v1526 = vpack.c.b16 %v1510, %v1510
        %v1527 = vpack.c.b16 %v1511, %v1511
        %v1528 = vpack.c.b16 %v1512, %v1512
        %v1530 = vshrl.u32 %v1433, 16
        %v1532 = vshll.u32 %v1433, 16
        %v1534 = vrot.slane %v1532, 1
        %v1535 = vor.u32 %v1530, %v1534
        %v1537 = vshll.u32 %v1513, 16
        %v1539 = vrot.slane %v1537, 1
        %v1540 = vsel %vm503, %v1535, %v1539
        %v1542 = vshrl.u32 %v1434, 16
        %v1544 = vshll.u32 %v1434, 16
        %v1546 = vrot.slane %v1544, 1
        %v1547 = vor.u32 %v1542, %v1546
        %v1549 = vshll.u32 %v1514, 16
        %v1551 = vrot.slane %v1549, 1
        %v1552 = vsel %vm503, %v1547, %v1551
        %v1554 = vshrl.u32 %v1435, 16
        %v1556 = vshll.u32 %v1435, 16
        %v1558 = vrot.slane %v1556, 1
        %v1559 = vor.u32 %v1554, %v1558
        %v1561 = vshll.u32 %v1515, 16
        %v1563 = vrot.slane %v1561, 1
        %v1564 = vsel %vm503, %v1559, %v1563
        %v1566 = vshrl.u32 %v1436, 16
        %v1568 = vshll.u32 %v1436, 16
        %v1570 = vrot.slane %v1568, 1
        %v1571 = vor.u32 %v1566, %v1570
        %v1573 = vshll.u32 %v1516, 16
        %v1575 = vrot.slane %v1573, 1
        %v1576 = vsel %vm503, %v1571, %v1575
        %v1578 = vshrl.u32 %v1437, 16
        %v1580 = vshll.u32 %v1437, 16
        %v1582 = vrot.slane %v1580, 1
        %v1583 = vor.u32 %v1578, %v1582
        %v1585 = vshll.u32 %v1517, 16
        %v1587 = vrot.slane %v1585, 1
        %v1588 = vsel %vm503, %v1583, %v1587
        %v1590 = vshrl.u32 %v1438, 16
        %v1592 = vshll.u32 %v1438, 16
        %v1594 = vrot.slane %v1592, 1
        %v1595 = vor.u32 %v1590, %v1594
        %v1597 = vshll.u32 %v1518, 16
        %v1599 = vrot.slane %v1597, 1
        %v1600 = vsel %vm503, %v1595, %v1599
        %v1602 = vshrl.u32 %v1439, 16
        %v1604 = vshll.u32 %v1439, 16
        %v1606 = vrot.slane %v1604, 1
        %v1607 = vor.u32 %v1602, %v1606
        %v1609 = vshll.u32 %v1519, 16
        %v1611 = vrot.slane %v1609, 1
        %v1612 = vsel %vm503, %v1607, %v1611
        %v1614 = vshrl.u32 %v1440, 16
        %v1616 = vshll.u32 %v1440, 16
        %v1618 = vrot.slane %v1616, 1
        %v1619 = vor.u32 %v1614, %v1618
        %v1621 = vshll.u32 %v1520, 16
        %v1623 = vrot.slane %v1621, 1
        %v1624 = vsel %vm503, %v1619, %v1623
        %v1626 = vshrl.u32 %v1441, 16
        %v1628 = vshll.u32 %v1441, 16
        %v1630 = vrot.slane %v1628, 1
        %v1631 = vor.u32 %v1626, %v1630
        %v1633 = vshll.u32 %v1521, 16
        %v1635 = vrot.slane %v1633, 1
        %v1636 = vsel %vm503, %v1631, %v1635
        %v1638 = vshrl.u32 %v1442, 16
        %v1640 = vshll.u32 %v1442, 16
        %v1642 = vrot.slane %v1640, 1
        %v1643 = vor.u32 %v1638, %v1642
        %v1645 = vshll.u32 %v1522, 16
        %v1647 = vrot.slane %v1645, 1
        %v1648 = vsel %vm503, %v1643, %v1647
        %v1650 = vshrl.u32 %v1443, 16
        %v1652 = vshll.u32 %v1443, 16
        %v1654 = vrot.slane %v1652, 1
        %v1655 = vor.u32 %v1650, %v1654
        %v1657 = vshll.u32 %v1523, 16
        %v1659 = vrot.slane %v1657, 1
        %v1660 = vsel %vm503, %v1655, %v1659
        %v1662 = vshrl.u32 %v1444, 16
        %v1664 = vshll.u32 %v1444, 16
        %v1666 = vrot.slane %v1664, 1
        %v1667 = vor.u32 %v1662, %v1666
        %v1669 = vshll.u32 %v1524, 16
        %v1671 = vrot.slane %v1669, 1
        %v1672 = vsel %vm503, %v1667, %v1671
        %v1674 = vshrl.u32 %v1445, 16
        %v1676 = vshll.u32 %v1445, 16
        %v1678 = vrot.slane %v1676, 1
        %v1679 = vor.u32 %v1674, %v1678
        %v1681 = vshll.u32 %v1525, 16
        %v1683 = vrot.slane %v1681, 1
        %v1684 = vsel %vm503, %v1679, %v1683
        %v1686 = vshrl.u32 %v1446, 16
        %v1688 = vshll.u32 %v1446, 16
        %v1690 = vrot.slane %v1688, 1
        %v1691 = vor.u32 %v1686, %v1690
        %v1693 = vshll.u32 %v1526, 16
        %v1695 = vrot.slane %v1693, 1
        %v1696 = vsel %vm503, %v1691, %v1695
        %v1698 = vshrl.u32 %v1447, 16
        %v1700 = vshll.u32 %v1447, 16
        %v1702 = vrot.slane %v1700, 1
        %v1703 = vor.u32 %v1698, %v1702
        %v1705 = vshll.u32 %v1527, 16
        %v1707 = vrot.slane %v1705, 1
        %v1708 = vsel %vm503, %v1703, %v1707
        %v1710 = vshrl.u32 %v1448, 16
        %v1712 = vshll.u32 %v1448, 16
        %v1714 = vrot.slane %v1712, 1
        %v1715 = vor.u32 %v1710, %v1714
        %v1717 = vshll.u32 %v1528, 16
        %v1719 = vrot.slane %v1717, 1
        %v1720 = vsel %vm503, %v1715, %v1719
        %1721 = vrot.lane.b32.xlu0 %v1540, 70
        %v1722 = vpop.permute.xlu0 %1721
        %1723 = vrot.lane.b32.xlu0 %v1552, 70
        %v1724 = vpop.permute.xlu0 %1723
        %1725 = vrot.lane.b32.xlu0 %v1564, 70
        %v1726 = vpop.permute.xlu0 %1725
        %1727 = vrot.lane.b32.xlu0 %v1576, 70
        %v1728 = vpop.permute.xlu0 %1727
        %1729 = vrot.lane.b32.xlu0 %v1588, 70
        %v1730 = vpop.permute.xlu0 %1729
        %1731 = vrot.lane.b32.xlu0 %v1600, 70
        %v1732 = vpop.permute.xlu0 %1731
        %1733 = vrot.lane.b32.xlu0 %v1612, 70
        %v1734 = vpop.permute.xlu0 %1733
        %1735 = vrot.lane.b32.xlu0 %v1624, 70
        %v1736 = vpop.permute.xlu0 %1735
        %1737 = vrot.lane.b32.xlu0 %v1636, 70
        %v1738 = vpop.permute.xlu0 %1737
        %1739 = vrot.lane.b32.xlu0 %v1648, 70
        %v1740 = vpop.permute.xlu0 %1739
        %1741 = vrot.lane.b32.xlu0 %v1660, 70
        %v1742 = vpop.permute.xlu0 %1741
        %1743 = vrot.lane.b32.xlu0 %v1672, 70
        %v1744 = vpop.permute.xlu0 %1743
        %1745 = vrot.lane.b32.xlu0 %v1684, 70
        %v1746 = vpop.permute.xlu0 %1745
        %1747 = vrot.lane.b32.xlu0 %v1696, 70
        %v1748 = vpop.permute.xlu0 %1747
        %1749 = vrot.lane.b32.xlu0 %v1708, 70
        %v1750 = vpop.permute.xlu0 %1749
        %1751 = vrot.lane.b32.xlu0 %v1720, 70
        %v1752 = vpop.permute.xlu0 %1751
        %v1769 = vunpack.c.l.b16 %v359
        %v1770 = vunpack.c.l.b16 %v360
        %v1771 = vunpack.c.l.b16 %v361
        %v1772 = vunpack.c.l.b16 %v362
        %v1773 = vunpack.c.l.b16 %v363
        %v1774 = vunpack.c.l.b16 %v364
        %v1775 = vunpack.c.l.b16 %v365
        %v1776 = vunpack.c.l.b16 %v366
        %v1777 = vunpack.c.l.b16 %v367
        %v1778 = vunpack.c.l.b16 %v368
        %v1779 = vunpack.c.l.b16 %v369
        %v1780 = vunpack.c.l.b16 %v370
        %v1781 = vunpack.c.l.b16 %v371
        %v1782 = vunpack.c.l.b16 %v372
        %v1783 = vunpack.c.l.b16 %v373
        %v1784 = vunpack.c.l.b16 %v374
        %v1785 = vpack.c.b16 %v1402, %v1769
        %v1786 = vpack.c.b16 %v1404, %v1770
        %v1787 = vpack.c.b16 %v1406, %v1771
        %v1788 = vpack.c.b16 %v1408, %v1772
        %v1789 = vpack.c.b16 %v1410, %v1773
        %v1790 = vpack.c.b16 %v1412, %v1774
        %v1791 = vpack.c.b16 %v1414, %v1775
        %v1792 = vpack.c.b16 %v1416, %v1776
        %v1793 = vpack.c.b16 %v1418, %v1777
        %v1794 = vpack.c.b16 %v1420, %v1778
        %v1795 = vpack.c.b16 %v1422, %v1779
        %v1796 = vpack.c.b16 %v1424, %v1780
        %v1797 = vpack.c.b16 %v1426, %v1781
        %v1798 = vpack.c.b16 %v1428, %v1782
        %v1799 = vpack.c.b16 %v1430, %v1783
        %v1800 = vpack.c.b16 %v1432, %v1784
        %v1801 = vrot.slane %v1785, 1
        %v1802 = vrot.slane %v1513, 1
        %v1803 = vsel %vm776, %v1801, %v1802
        %v1804 = vrot.slane %v1786, 1
        %v1805 = vrot.slane %v1514, 1
        %v1806 = vsel %vm776, %v1804, %v1805
        %v1807 = vrot.slane %v1787, 1
        %v1808 = vrot.slane %v1515, 1
        %v1809 = vsel %vm776, %v1807, %v1808
        %v1810 = vrot.slane %v1788, 1
        %v1811 = vrot.slane %v1516, 1
        %v1812 = vsel %vm776, %v1810, %v1811
        %v1813 = vrot.slane %v1789, 1
        %v1814 = vrot.slane %v1517, 1
        %v1815 = vsel %vm776, %v1813, %v1814
        %v1816 = vrot.slane %v1790, 1
        %v1817 = vrot.slane %v1518, 1
        %v1818 = vsel %vm776, %v1816, %v1817
        %v1819 = vrot.slane %v1791, 1
        %v1820 = vrot.slane %v1519, 1
        %v1821 = vsel %vm776, %v1819, %v1820
        %v1822 = vrot.slane %v1792, 1
        %v1823 = vrot.slane %v1520, 1
        %v1824 = vsel %vm776, %v1822, %v1823
        %v1825 = vrot.slane %v1793, 1
        %v1826 = vrot.slane %v1521, 1
        %v1827 = vsel %vm776, %v1825, %v1826
        %v1828 = vrot.slane %v1794, 1
        %v1829 = vrot.slane %v1522, 1
        %v1830 = vsel %vm776, %v1828, %v1829
        %v1831 = vrot.slane %v1795, 1
        %v1832 = vrot.slane %v1523, 1
        %v1833 = vsel %vm776, %v1831, %v1832
        %v1834 = vrot.slane %v1796, 1
        %v1835 = vrot.slane %v1524, 1
        %v1836 = vsel %vm776, %v1834, %v1835
        %v1837 = vrot.slane %v1797, 1
        %v1838 = vrot.slane %v1525, 1
        %v1839 = vsel %vm776, %v1837, %v1838
        %v1840 = vrot.slane %v1798, 1
        %v1841 = vrot.slane %v1526, 1
        %v1842 = vsel %vm776, %v1840, %v1841
        %v1843 = vrot.slane %v1799, 1
        %v1844 = vrot.slane %v1527, 1
        %v1845 = vsel %vm776, %v1843, %v1844
        %v1846 = vrot.slane %v1800, 1
        %v1847 = vrot.slane %v1528, 1
        %v1848 = vsel %vm776, %v1846, %v1847
        %1849 = vrot.lane.b32.xlu0 %v1803, 80
        %v1850 = vpop.permute.xlu0 %1849
        %1851 = vrot.lane.b32.xlu0 %v1806, 80
        %v1852 = vpop.permute.xlu0 %1851
        %1853 = vrot.lane.b32.xlu0 %v1809, 80
        %v1854 = vpop.permute.xlu0 %1853
        %1855 = vrot.lane.b32.xlu0 %v1812, 80
        %v1856 = vpop.permute.xlu0 %1855
        %1857 = vrot.lane.b32.xlu0 %v1815, 80
        %v1858 = vpop.permute.xlu0 %1857
        %1859 = vrot.lane.b32.xlu0 %v1818, 80
        %v1860 = vpop.permute.xlu0 %1859
        %1861 = vrot.lane.b32.xlu0 %v1821, 80
        %v1862 = vpop.permute.xlu0 %1861
        %1863 = vrot.lane.b32.xlu0 %v1824, 80
        %v1864 = vpop.permute.xlu0 %1863
        %1865 = vrot.lane.b32.xlu0 %v1827, 80
        %v1866 = vpop.permute.xlu0 %1865
        %1867 = vrot.lane.b32.xlu0 %v1830, 80
        %v1868 = vpop.permute.xlu0 %1867
        %1869 = vrot.lane.b32.xlu0 %v1833, 80
        %v1870 = vpop.permute.xlu0 %1869
        %1871 = vrot.lane.b32.xlu0 %v1836, 80
        %v1872 = vpop.permute.xlu0 %1871
        %1873 = vrot.lane.b32.xlu0 %v1839, 80
        %v1874 = vpop.permute.xlu0 %1873
        %1875 = vrot.lane.b32.xlu0 %v1842, 80
        %v1876 = vpop.permute.xlu0 %1875
        %1877 = vrot.lane.b32.xlu0 %v1845, 80
        %v1878 = vpop.permute.xlu0 %1877
        %1879 = vrot.lane.b32.xlu0 %v1848, 80
        %v1880 = vpop.permute.xlu0 %1879
        %vm1881 = vcmask 80896
        %v1883 = vsel %vm1881, %v439, %v697
        %v1885 = vsel %vm1881, %v440, %v699
        %v1887 = vsel %vm1881, %v441, %v701
        %v1889 = vsel %vm1881, %v442, %v703
        %v1891 = vsel %vm1881, %v443, %v705
        %v1893 = vsel %vm1881, %v444, %v707
        %v1895 = vsel %vm1881, %v445, %v709
        %v1897 = vsel %vm1881, %v446, %v711
        %v1899 = vsel %vm1881, %v447, %v713
        %v1901 = vsel %vm1881, %v448, %v715
        %v1903 = vsel %vm1881, %v449, %v717
        %v1905 = vsel %vm1881, %v450, %v719
        %v1907 = vsel %vm1881, %v451, %v721
        %v1909 = vsel %vm1881, %v452, %v723
        %v1911 = vsel %vm1881, %v453, %v725
        %v1913 = vsel %vm1881, %v454, %v727
        %vm1914 = vcmask 162816
        %v1916 = vsel %vm1914, %v1883, %v826
        %v1918 = vsel %vm1914, %v1885, %v828
        %v1920 = vsel %vm1914, %v1887, %v830
        %v1922 = vsel %vm1914, %v1889, %v832
        %v1924 = vsel %vm1914, %v1891, %v834
        %v1926 = vsel %vm1914, %v1893, %v836
        %v1928 = vsel %vm1914, %v1895, %v838
        %v1930 = vsel %vm1914, %v1897, %v840
        %v1932 = vsel %vm1914, %v1899, %v842
        %v1934 = vsel %vm1914, %v1901, %v844
        %v1936 = vsel %vm1914, %v1903, %v846
        %v1938 = vsel %vm1914, %v1905, %v848
        %v1940 = vsel %vm1914, %v1907, %v850
        %v1942 = vsel %vm1914, %v1909, %v852
        %v1944 = vsel %vm1914, %v1911, %v854
        %v1946 = vsel %vm1914, %v1913, %v856
        %vm1947 = vcmask 244736
        %v1949 = vsel %vm1947, %v1916, %v938
        %v1951 = vsel %vm1947, %v1918, %v940
        %v1953 = vsel %vm1947, %v1920, %v942
        %v1955 = vsel %vm1947, %v1922, %v944
        %v1957 = vsel %vm1947, %v1924, %v946
        %v1959 = vsel %vm1947, %v1926, %v948
        %v1961 = vsel %vm1947, %v1928, %v950
        %v1963 = vsel %vm1947, %v1930, %v952
        %v1965 = vsel %vm1947, %v1932, %v954
        %v1967 = vsel %vm1947, %v1934, %v956
        %v1969 = vsel %vm1947, %v1936, %v958
        %v1971 = vsel %vm1947, %v1938, %v960
        %v1973 = vsel %vm1947, %v1940, %v962
        %v1975 = vsel %vm1947, %v1942, %v964
        %v1977 = vsel %vm1947, %v1944, %v966
        %v1979 = vsel %vm1947, %v1946, %v968
        %vm1980 = vcmask 326656
        %v1982 = vsel %vm1980, %v1949, %v1210
        %v1984 = vsel %vm1980, %v1951, %v1212
        %v1986 = vsel %vm1980, %v1953, %v1214
        %v1988 = vsel %vm1980, %v1955, %v1216
        %v1990 = vsel %vm1980, %v1957, %v1218
        %v1992 = vsel %vm1980, %v1959, %v1220
        %v1994 = vsel %vm1980, %v1961, %v1222
        %v1996 = vsel %vm1980, %v1963, %v1224
        %v1998 = vsel %vm1980, %v1965, %v1226
        %v2000 = vsel %vm1980, %v1967, %v1228
        %v2002 = vsel %vm1980, %v1969, %v1230
        %v2004 = vsel %vm1980, %v1971, %v1232
        %v2006 = vsel %vm1980, %v1973, %v1234
        %v2008 = vsel %vm1980, %v1975, %v1236
        %v2010 = vsel %vm1980, %v1977, %v1238
        %v2012 = vsel %vm1980, %v1979, %v1240
        %vm2013 = vcmask 408576
        %v2015 = vsel %vm2013, %v1982, %v1338
        %v2017 = vsel %vm2013, %v1984, %v1340
        %v2019 = vsel %vm2013, %v1986, %v1342
        %v2021 = vsel %vm2013, %v1988, %v1344
        %v2023 = vsel %vm2013, %v1990, %v1346
        %v2025 = vsel %vm2013, %v1992, %v1348
        %v2027 = vsel %vm2013, %v1994, %v1350
        %v2029 = vsel %vm2013, %v1996, %v1352
        %v2031 = vsel %vm2013, %v1998, %v1354
        %v2033 = vsel %vm2013, %v2000, %v1356
        %v2035 = vsel %vm2013, %v2002, %v1358
        %v2037 = vsel %vm2013, %v2004, %v1360
        %v2039 = vsel %vm2013, %v2006, %v1362
        %v2041 = vsel %vm2013, %v2008, %v1364
        %v2043 = vsel %vm2013, %v2010, %v1366
        %v2045 = vsel %vm2013, %v2012, %v1368
        %vm2046 = vcmask 490496
        %v2048 = vsel %vm2046, %v2015, %v1450
        %v2050 = vsel %vm2046, %v2017, %v1452
        %v2052 = vsel %vm2046, %v2019, %v1454
        %v2054 = vsel %vm2046, %v2021, %v1456
        %v2056 = vsel %vm2046, %v2023, %v1458
        %v2058 = vsel %vm2046, %v2025, %v1460
        %v2060 = vsel %vm2046, %v2027, %v1462
        %v2062 = vsel %vm2046, %v2029, %v1464
        %v2064 = vsel %vm2046, %v2031, %v1466
        %v2066 = vsel %vm2046, %v2033, %v1468
        %v2068 = vsel %vm2046, %v2035, %v1470
        %v2070 = vsel %vm2046, %v2037, %v1472
        %v2072 = vsel %vm2046, %v2039, %v1474
        %v2074 = vsel %vm2046, %v2041, %v1476
        %v2076 = vsel %vm2046, %v2043, %v1478
        %v2078 = vsel %vm2046, %v2045, %v1480
        %vm2079 = vcmask 572416
        %v2081 = vsel %vm2079, %v2048, %v1722
        %v2083 = vsel %vm2079, %v2050, %v1724
        %v2085 = vsel %vm2079, %v2052, %v1726
        %v2087 = vsel %vm2079, %v2054, %v1728
        %v2089 = vsel %vm2079, %v2056, %v1730
        %v2091 = vsel %vm2079, %v2058, %v1732
        %v2093 = vsel %vm2079, %v2060, %v1734
        %v2095 = vsel %vm2079, %v2062, %v1736
        %v2097 = vsel %vm2079, %v2064, %v1738
        %v2099 = vsel %vm2079, %v2066, %v1740
        %v2101 = vsel %vm2079, %v2068, %v1742
        %v2103 = vsel %vm2079, %v2070, %v1744
        %v2105 = vsel %vm2079, %v2072, %v1746
        %v2107 = vsel %vm2079, %v2074, %v1748
        %v2109 = vsel %vm2079, %v2076, %v1750
        %v2111 = vsel %vm2079, %v2078, %v1752
        %vm2112 = vcmask 654336
        %v2114 = vsel %vm2112, %v2081, %v1850
        %v2116 = vsel %vm2112, %v2083, %v1852
        %v2118 = vsel %vm2112, %v2085, %v1854
        %v2120 = vsel %vm2112, %v2087, %v1856
        %v2122 = vsel %vm2112, %v2089, %v1858
        %v2124 = vsel %vm2112, %v2091, %v1860
        %v2126 = vsel %vm2112, %v2093, %v1862
        %v2128 = vsel %vm2112, %v2095, %v1864
        %v2130 = vsel %vm2112, %v2097, %v1866
        %v2132 = vsel %vm2112, %v2099, %v1868
        %v2134 = vsel %vm2112, %v2101, %v1870
        %v2136 = vsel %vm2112, %v2103, %v1872
        %v2138 = vsel %vm2112, %v2105, %v1874
        %v2140 = vsel %vm2112, %v2107, %v1876
        %v2142 = vsel %vm2112, %v2109, %v1878
        %v2144 = vsel %vm2112, %v2111, %v1880
        %v2145 = vld [vmem:[%s1] sm:$0xf]
        %vm2146 = vcmask 736256
        %v2148 = vsel %vm2146, %v2145, 0
        %v2150 = vsel %vm2146, %v2114, 0
        %v2152 = vsel %vm2146, %v2116, 0
        %v2154 = vsel %vm2146, %v2118, 0
        %v2156 = vsel %vm2146, %v2120, 0
        %v2158 = vsel %vm2146, %v2122, 0
        %v2160 = vsel %vm2146, %v2124, 0
        %v2162 = vsel %vm2146, %v2126, 0
        %v2164 = vsel %vm2146, %v2128, 0
        %v2166 = vsel %vm2146, %v2130, 0
        %v2168 = vsel %vm2146, %v2132, 0
        %v2170 = vsel %vm2146, %v2134, 0
        %v2172 = vsel %vm2146, %v2136, 0
        %v2174 = vsel %vm2146, %v2138, 0
        %v2176 = vsel %vm2146, %v2140, 0
        %v2178 = vsel %vm2146, %v2142, 0
        %v2180 = vsel %vm2146, %v2144, 0
        %2182 = vmatprep.subr.bf16.mxu0 0
        %2183 = vmatpush1.bf16.xpose.msra.mxu0 %v2150
        %2184 = vmatprep.subr.bf16.mxu0 0
        %2185 = vmatpush1.bf16.xpose.msra.mxu0 %v2152
        %2186 = vmatprep.subr.bf16.mxu0 0
        %2187 = vmatpush1.bf16.xpose.msra.mxu0 %v2154
        %2188 = vmatprep.subr.bf16.mxu0 0
        %2189 = vmatpush1.bf16.xpose.msra.mxu0 %v2156
        %2190 = vmatprep.subr.bf16.mxu0 0
        %2191 = vmatpush1.bf16.xpose.msra.mxu0 %v2158
        %2192 = vmatprep.subr.bf16.mxu0 0
        %2193 = vmatpush1.bf16.xpose.msra.mxu0 %v2160
        %2194 = vmatprep.subr.bf16.mxu0 0
        %2195 = vmatpush1.bf16.xpose.msra.mxu0 %v2162
        %2196 = vmatprep.subr.bf16.mxu0 0
        %2197 = vmatpush1.bf16.xpose.msra.mxu0 %v2164
        %2198 = vmatprep.subr.bf16.mxu0 0
        %2199 = vmatpush1.bf16.xpose.msra.mxu0 %v2166
        %2200 = vmatprep.subr.bf16.mxu0 0
        %2201 = vmatpush1.bf16.xpose.msra.mxu0 %v2168
        %2202 = vmatprep.subr.bf16.mxu0 0
        %2203 = vmatpush1.bf16.xpose.msra.mxu0 %v2170
        %2204 = vmatprep.subr.bf16.mxu0 0
        %2205 = vmatpush1.bf16.xpose.msra.mxu0 %v2172
        %2206 = vmatprep.subr.bf16.mxu0 0
        %2207 = vmatpush1.bf16.xpose.msra.mxu0 %v2174
        %2208 = vmatprep.subr.bf16.mxu0 0
        %2209 = vmatpush1.bf16.xpose.msra.mxu0 %v2176
        %2210 = vmatprep.subr.bf16.mxu0 0
        %2211 = vmatpush1.bf16.xpose.msra.mxu0 %v2178
        %2212 = vmatprep.subr.bf16.mxu0 0
        %2213 = vmatpush1.bf16.xpose.msra.mxu0 %v2180
        %2214 = vmatprep.mubr.bf16.mxu0 0
        %2215 = vmatmul.mubr.bf16.gmra.mrb[0].mxu0 %v2148
        %v2216 = vpop.f32.mrb[0].mxu0
        %v2217 = vadd.f32 0.0, %v2216
        %v2218 = vpop.f32.mrb[0].mxu0
        %v2219 = vadd.f32 0.0, %v2218
        %v2220 = vpop.f32.mrb[0].mxu0
        %v2221 = vpop.f32.mrb[0].mxu0
        %2222 = vdwg.mxu0
        %v2223 = vpack.c.bf16 %v2217, %v2217
        %v2224 = vpack.c.bf16 %v2219, %v2219
        %v2227 = vunpack.c.l.b16 %v2223
        %v2228 = vunpack.c.l.b16 %v2224
        %v2229 = vpack.c.b16 %v2228, %v2227
        %2231 = vst [vmem:[%s164] sm:$0xff] %v2229
        %v2232 = vadd.f32 %v2217, %v2219
        %2233 = vadd.xlane.f32.xlu0 %v2232
        %v2234 = vpop.xlane.xlu0 %2233
        %v2235 = vmul.f32 %v2217, %v2217
        %v2236 = vmul.f32 %v2219, %v2219
        %v2237 = vadd.f32 %v2235, %v2236
        %2238 = vadd.xlane.f32.xlu0 %v2237
        %v2239 = vpop.xlane.xlu0 %2238
        %vm2240 = vcmask 7168
        %v2241 = vsel %vm2240, %v2234, %v2239
        %vm2242 = vcmask 15360
        %2243 = vst.msk [vmem:[%s179] sm:$0xff] %vm2242, %v2241
        %s2244 = sand.u32 %s73, 1
        %s2245 = scalar_lea.sflag [#allocation3], %s2244
        %s2246 = sand.u32 %s73, 1
        %s2247 = smul.addr %s2246, 8
        %s2248 = scalar_lea.vmem [#allocation2], %s2247
        %p2249 = scmp.lt.s32.totalorder %s18, 1
        %s2250 = scalar_select %p2249, %s18, 1
        %s2251 = smul.addr %s2250, 8
        %s2252 = scalar_lea.vmem %s3, %s2251
        // Predicated region
        $region29: #{tpu_custom_call.1} parent=27 // pred_check
          %p2253 = pneg %p83
        $region30: #{tpu_custom_call.1} parent=27 // pred_check_branch
          %2255 = sbr.rel (%p2253) target = $region32
        $region31: #{tpu_custom_call.1} parent=27 // pred_region
          %s2257 = ssub.s32 128, 128
          %2258 = vsyncadd %s2245, %s2257
          %s2259 = smul.addr %s18, 2
          %s2260 = smul.addr %s2259, 64
          %s2261 = scalar_lea.hbm %s2, %s2260
          %s2263 = sshll.u32 %s2248, 4
          %s2264 = int_to_ptr.vmem [resolvable:$true] %s2263
          %2266 = dma.vmem_to_hbm [thread:$0]  %s2264, 128, %s2261, %s2245
        $region32: #{tpu_custom_call.1} parent=27 // pred_fallthru
          _
        // Predicated region
        $region33: #{tpu_custom_call.1} parent=27 // pred_check
          %p2267 = pneg %p109
        $region34: #{tpu_custom_call.1} parent=27 // pred_check_branch
          %2269 = sbr.rel (%p2267) target = $region36
        $region35: #{tpu_custom_call.1} parent=27 // pred_region
          _
        $region36: #{tpu_custom_call.1} parent=27 // pred_fallthru
          _
      $region28: #{tpu_custom_call.1} parent=5 // pred_fallthru
        _
      %p2270 = scmp.le.s32.totalorder 2, %s13
      // Predicated region
      $region37: #{tpu_custom_call.1} parent=5 // pred_check
        %p2271 = pneg %p2270
      $region38: #{tpu_custom_call.1} parent=5 // pred_check_branch
        %2273 = sbr.rel (%p2271) target = $region40
      $region39: #{tpu_custom_call.1} parent=5 // pred_region
        %s2274 = ssub.s32 %s13, 2
        // Predicated region
        $region41: #{tpu_custom_call.1} parent=39 // pred_check
          %p2275 = pneg %p89
        $region42: #{tpu_custom_call.1} parent=39 // pred_check_branch
          %2277 = sbr.rel (%p2275) target = $region44
        $region43: #{tpu_custom_call.1} parent=39 // pred_region
          %s2278 = sand.u32 %s74, 1
          %s2279 = scalar_lea.sflag [#allocation3], %s2278
          %s2280 = sand.u32 %s74, 1
          %s2281 = smul.addr %s2280, 8
          %s2282 = scalar_lea.vmem [#allocation2], %s2281
          %2283 = dma.done %s2279, 128
        $region44: #{tpu_custom_call.1} parent=39 // pred_fallthru
          _
        // Predicated region
        $region45: #{tpu_custom_call.1} parent=39 // pred_check
          %p2284 = pneg %p115
        $region46: #{tpu_custom_call.1} parent=39 // pred_check_branch
          %2286 = sbr.rel (%p2284) target = $region48
        $region47: #{tpu_custom_call.1} parent=39 // pred_region
          %p2287 = scmp.lt.s32.totalorder %s19, 1
          %s2288 = scalar_select %p2287, %s19, 1
          %s2289 = smul.addr %s2288, 8
          %s2290 = scalar_lea.vmem %s3, %s2289
        $region48: #{tpu_custom_call.1} parent=39 // pred_fallthru
          _
      $region40: #{tpu_custom_call.1} parent=5 // pred_fallthru
        _
    $region6: #{tpu_custom_call.1} parent=1 // loop_footer
      %s17 = sadd.s32 1, %s13
    $region7: #{tpu_custom_call.1} parent=1 // loop_footer_branch
      %12 = sbr.rel target = $region3
    $region8: #{tpu_custom_call.1} parent=1 // loop_exit
      _
    %2291 = vsyncpa [#allocation3], 1
    %s2292 = scalar_lea.sflag [#allocation3], 1
    %2293 = vsyncpa %s2292, 1

</llo_original>
